<compile_context>
chip_gen: v6e
topology: v6e:2x2x1
jax: 0.10.0
libtpu: 0.0.40
codegen_flags: <defaults>
</compile_context>

<pallas_src>
import math

import jax
import jax.numpy as jnp
from jax.experimental import pallas as pl
from jax.experimental.pallas import tpu as pltpu


def _round_up(x, m):
    return ((x + m - 1) // m) * m


def _pad_cols_to(mat, n_to):
    n = mat.shape[-1]
    if n == n_to:
        return mat
    return jnp.pad(mat, ((0, 0), (0, n_to - n)))


# --------------------------- in_proj: fused matmul + bias ----------------------------
# Single K block (K = dim is small for in_proj); no f32 accumulator scratch and no
# reduction grid axis.  Weight/bias arrive pre-transposed & lane-padded from
# pack_params(), so the store is unmasked / lane-dense.

def _linear_kernel(x_ref, w_ref, b_ref, o_ref):
    o_ref[...] = (jnp.dot(x_ref[...], w_ref[...], preferred_element_type=jnp.float32)
                  + b_ref[...])


def pallas_linear(x2d, wT_packed, bias_row):
    M, K = x2d.shape
    K2, Np = wT_packed.shape
    assert K == K2 and Np % 128 == 0
    # TODO(synk): add K/N grid axes (with an accumulator) for production d_inner sizes.
    tm = min(128, _round_up(M, 8))
    Mp = _round_up(M, tm)
    x_p = x2d if Mp == M else jnp.pad(x2d, ((0, Mp - M), (0, 0)))
    out = pl.pallas_call(
        _linear_kernel,
        grid=(Mp // tm,),
        in_specs=[pl.BlockSpec((tm, K), lambda i: (i, 0)),
                  pl.BlockSpec((K, Np), lambda i: (0, 0)),
                  pl.BlockSpec((1, Np), lambda i: (0, 0))],
        out_specs=pl.BlockSpec((tm, Np), lambda i: (i, 0)),
        out_shape=jax.ShapeDtypeStruct((Mp, Np), jnp.float32),
        compiler_params=pltpu.CompilerParams(dimension_semantics=("parallel",)),
    )(x_p, wT_packed, bias_row)
    return out if Mp == M else out[:M]


# -------- fused dt_proj/gamma + softplus + dA + selective scan + gate + out_proj -----

def _mamba_fused_kernel(xcp_ref, cs_ref, csT_ref, res_ref,
                        dtw_ref, dtb_ref, spa_ref, spb_ref, ct_ref,
                        gw_ref, gb_ref, wout_ref, bout_ref, o_ref):
    L, D = xcp_ref.shape
    S = spb_ref.shape[0]

    # dt projection computed directly in the scan's (S, L) layout (no transpose):
    #   deltaT[s, l] = softplus( sum_d dt_w[s, d] * conv_state[l, d] + dt_b[s] )
    dt_rawT = (jnp.dot(dtw_ref[...], csT_ref[...], preferred_element_type=jnp.float32)
               + dtb_ref[...])                                         # (S, L)
    deltaT = jnp.maximum(dt_rawT, 0.0) + jnp.log(1.0 + jnp.exp(-jnp.abs(dt_rawT)))
    dAT = jnp.exp(-deltaT * spa_ref[...])                              # (S, L)  (EUP exp)

    # gamma = last x_proj row applied to conv_state (lane reduction, no MXU needed).
    gamma = jnp.sum(cs_ref[...] * gw_ref[...], axis=1, keepdims=True) + gb_ref[...]  # (L,1)

    # Selective scan.  h is a vreg-carried (S, D) value; the only serial work per
    # step is h = h * a + x*dB (VPU).  The dA column slices, x row slices and y row
    # inserts have no dependence on h, so the static unroll lets them overlap.
    x = xcp_ref[...]                                                   # (L, D)
    dB = spb_ref[...]                                                  # (S, D) = softplus(B)^T
    dC = ct_ref[...]                                                   # (S, D) = C^T
    row_id = jax.lax.broadcasted_iota(jnp.int32, (L, D), 0)
    h = jnp.zeros((S, D), jnp.float32)
    y = jnp.zeros((L, D), jnp.float32)
    for t in range(L):                          # static unroll (L is small & static)
        h = h * dAT[:, t:t + 1] + x[t:t + 1, :] * dB
        y_t = jnp.sum(h * dC, axis=0, keepdims=True)                   # (1, D) sublane reduce
        y = jnp.where(row_id == t, y_t, y)                             # register row insert

    # Gate + residual + out_proj fused (VPU gate overlaps the MXU matmul).
    gate = gamma * (1.0 / (1.0 + jnp.exp(-gamma)))                     # SiLU(gamma)
    a = y * gate + res_ref[...]                                        # (L, D)
    o_ref[...] = (jnp.dot(a, wout_ref[...], preferred_element_type=jnp.float32)
                  + bout_ref[...])                                     # (L, Np) lane-dense


def mamba_fused(x_copy, conv_state, res, pk):
    B, L, D = x_copy.shape
    S = pk['dt_w'].shape[0]
    Np = pk['out_wT'].shape[1]
    # Tiny XLA transpose so the kernel can build delta/dA in the (S, L) layout
    # without any in-kernel transpose.
    csT = jnp.swapaxes(conv_state, 1, 2)                               # (B, D, L)
    return pl.pallas_call(
        _mamba_fused_kernel,
        grid=(B,),
        in_specs=[pl.BlockSpec((None, L, D), lambda b: (b, 0, 0)),     # x_copy
                  pl.BlockSpec((None, L, D), lambda b: (b, 0, 0)),     # conv_state
                  pl.BlockSpec((None, D, L), lambda b: (b, 0, 0)),     # conv_state^T
                  pl.BlockSpec((None, L, D), lambda b: (b, 0, 0)),     # res
                  pl.BlockSpec((S, D), lambda b: (0, 0)),              # dt_proj_w
                  pl.BlockSpec((S, 1), lambda b: (0, 0)),              # dt_proj_b (col)
                  pl.BlockSpec((S, 1), lambda b: (0, 0)),              # softplus(A) (col)
                  pl.BlockSpec((S, D), lambda b: (0, 0)),              # softplus(B)^T
                  pl.BlockSpec((S, D), lambda b: (0, 0)),              # C^T
                  pl.BlockSpec((1, D), lambda b: (0, 0)),              # gamma weight row
                  pl.BlockSpec((1, 1), lambda b: (0, 0)),              # gamma bias
                  pl.BlockSpec((D, Np), lambda b: (0, 0)),             # out_proj W^T (padded)
                  pl.BlockSpec((1, Np), lambda b: (0, 0))],            # out_proj b (padded)
        out_specs=pl.BlockSpec((None, L, Np), lambda b: (b, 0, 0)),
        out_shape=jax.ShapeDtypeStruct((B, L, Np), jnp.float32),
        compiler_params=pltpu.CompilerParams(dimension_semantics=("parallel",)),
    )(x_copy, conv_state, csT, res,
      pk['dt_w'], pk['dt_b_col'], pk['spA_col'], pk['spB_T'], pk['C_T'],
      pk['gamma_w_row'], pk['gamma_b'], pk['out_wT'], pk['out_b_row'])


# ----------------------------------- JAX glue ops ------------------------------------

def depthwise_conv1d_same(x_blc, w_ck, b_c):
    """PyTorch Conv1d(groups=C, padding='same', k=4) on channel-last (B, L, C):
    left pad 1, right pad 2, cross-correlation.  w_ck: (C, k), b_c: (C,).
    TODO(synk): tiny 4-tap depthwise conv left to XLA fusion (negligible traffic)."""
    B, L, C = x_blc.shape
    k = w_ck.shape[-1]
    left = (k - 1) // 2
    xp = jnp.pad(x_blc, ((0, 0), (left, (k - 1) - left), (0, 0)))
    out = jnp.broadcast_to(b_c[None, None, :], (B, L, C)).astype(x_blc.dtype)
    for j in range(k):
        out = out + xp[:, j:j + L, :] * w_ck[:, j][None, None, :]
    return out


# ------------------------------ hoisted weight packing --------------------------------

def pack_params(p):
    """One-time weight preprocessing (transpose / lane padding / softplus of
    parameter-only tensors), hoisted out of the per-call forward path."""
    d_inner = p['in_proj_w'].shape[0] // 2
    dim = p['in_proj_w'].shape[1]
    n1p = _round_up(2 * d_inner, 128)
    nop = _round_up(dim, 128)
    f32 = jnp.float32
    return dict(
        in_wT=_pad_cols_to(p['in_proj_w'].T.astype(f32), n1p),              # (dim, n1p)
        in_b=_pad_cols_to(p['in_proj_b'].astype(f32)[None, :], n1p),        # (1, n1p)
        conv_w=p['conv1d_w'][:, 0, :].astype(f32),                          # (D, k)
        conv_b=p['conv1d_b'].astype(f32),                                   # (D,)
        dt_w=p['dt_proj_w'].astype(f32),                                    # (S, D)
        dt_b_col=p['dt_proj_b'].astype(f32)[:, None],                       # (S, 1)
        spA_col=jax.nn.softplus(p['A'].astype(f32))[:, None],               # (S, 1)
        spB_T=jax.nn.softplus(p['B'].astype(f32)).T,                        # (S, D)
        C_T=p['C'].astype(f32).T,                                           # (S, D)
        gamma_w_row=p['x_proj_w'][-1:, :].astype(f32),                      # (1, D)
        gamma_b=p['x_proj_b'][-1:].astype(f32).reshape(1, 1),               # (1, 1)
        out_wT=_pad_cols_to(p['out_proj_w'].T.astype(f32), nop),            # (D, nop)
        out_b_row=_pad_cols_to(p['out_proj_b'].astype(f32)[None, :], nop),  # (1, nop)
    )


# --------------------------------- MambaBlock forward --------------------------------

def mamba_block_forward(pk, x):
    B, L, dim = x.shape
    d_inner = pk['dt_w'].shape[1]

    # in_proj: one fused matmul+bias kernel (N = 2*d_inner, lane-dense).
    xr = pallas_linear(x.reshape(B * L, dim), pk['in_wT'], pk['in_b'])
    xr = xr[:, :2 * d_inner].reshape(B, L, 2 * d_inner)
    x_copy, res = xr[..., :d_inner], xr[..., d_inner:]

    # depthwise 'same' conv over L (channel-last, tiny -> plain JAX).
    conv_state = depthwise_conv1d_same(x_copy, pk['conv_w'], pk['conv_b'])

    # fused dt_proj/gamma + softplus + dA + selective scan + gate + out_proj.
    out_p = mamba_fused(x_copy, conv_state, res, pk)                     # (B, L, nop)
    return out_p[..., :dim]


# ----------------------------- pure-JAX reference (f32) ------------------------------

def mamba_block_reference(p, x):
    B, L, _ = x.shape
    d_inner = p['in_proj_w'].shape[0] // 2
    d_state = p['A'].shape[0]
    x_and_res = x @ p['in_proj_w'].T + p['in_proj_b']
    x_copy, res = x_and_res[..., :d_inner], x_and_res[..., d_inner:]
    conv_state = depthwise_conv1d_same(x_copy, p['conv1d_w'][:, 0, :], p['conv1d_b'])
    x_ssm = conv_state @ p['x_proj_w'].T + p['x_proj_b']
    gamma = x_ssm[..., -1:]
    delta = jax.nn.softplus(conv_state @ p['dt_proj_w'].T + p['dt_proj_b'])
    dA = jnp.exp(-delta * jax.nn.softplus(p['A'])[None, None, :])
    dB = jax.nn.softplus(p['B'])
    dC = p['C']
    h = jnp.zeros((B, d_inner, d_state), jnp.float32)
    ys = []
    for t in range(L):
        h = h * dA[:, t][:, None, :] + x_copy[:, t][:, :, None] * dB[None]
        ys.append(jnp.sum(h * dC[None], axis=-1))
    y = jnp.stack(ys, axis=1)
    out = y * jax.nn.silu(gamma) + res
    return out @ p['out_proj_w'].T + p['out_proj_b']


# ------------------------------------ param init -------------------------------------

def init_params(key, dim, d_state, d_conv, expand):
    d_inner = int(expand * dim)
    ks = jax.random.split(key, 13)

    def uni(k, shape, bound):
        return jax.random.uniform(k, shape, jnp.float32, -bound, bound)

    k_in = 1.0 / math.sqrt(dim)
    k_conv = 1.0 / math.sqrt(1 * d_conv)
    k_inner = 1.0 / math.sqrt(d_inner)
    return dict(
        in_proj_w=uni(ks[0], (2 * d_inner, dim), k_in),
        in_proj_b=uni(ks[1], (2 * d_inner,), k_in),
        conv1d_w=uni(ks[2], (d_inner, 1, d_conv), k_conv),
        conv1d_b=uni(ks[3], (d_inner,), k_conv),
        x_proj_w=uni(ks[4], (d_state + d_conv + 1, d_inner), k_inner),
        x_proj_b=uni(ks[5], (d_state + d_conv + 1,), k_inner),
        dt_proj_w=uni(ks[6], (d_state, d_inner), k_inner),
        dt_proj_b=uni(ks[7], (d_state,), k_inner),
        A=jax.random.normal(ks[8], (d_state,), jnp.float32) / math.sqrt(d_state),
        B=jax.random.normal(ks[9], (d_inner, d_state), jnp.float32) / math.sqrt(d_state),
        C=jax.random.normal(ks[10], (d_inner, d_state), jnp.float32) / math.sqrt(d_state),
        out_proj_w=uni(ks[11], (dim, d_inner), k_inner),
        out_proj_b=uni(ks[12], (dim,), k_inner),
    )


# --------------------------------------- main ----------------------------------------

if __name__ == "__main__":
    DIM, D_STATE, D_CONV, EXPAND = 32, 16, 4, 2
    BATCH, SEQ = 2, 8

    root = jax.random.PRNGKey(0)
    pkey, xkey = jax.random.split(root)
    params = init_params(pkey, DIM, D_STATE, D_CONV, EXPAND)
    x = jax.random.normal(xkey, (BATCH, SEQ, DIM), dtype=jnp.float32)

    packed = pack_params(params)                 # hoisted, executed once
    fwd = jax.jit(mamba_block_forward)
    out = jax.block_until_ready(fwd(packed, x))

    ref = mamba_block_reference(params, x)

    assert out.shape == (BATCH, SEQ, DIM), out.shape
    assert bool(jnp.all(jnp.isfinite(out)))
    err = float(jnp.max(jnp.abs(out - ref)))
    assert bool(jnp.allclose(out, ref, atol=2e-2, rtol=2e-2)), err
    print("KERNEL_OK")
</pallas_src>

<mosaic_0001>
module attributes {stable_mosaic.version = 11 : i64} {
  func.func @_linear_kernel(%arg0: i32, %arg1: memref<16x32xf32, #tpu.memory_space<vmem>>, %arg2: memref<32x128xf32, #tpu.memory_space<vmem>>, %arg3: memref<1x128xf32, #tpu.memory_space<vmem>>, %arg4: memref<16x128xf32, #tpu.memory_space<vmem>>) attributes {dimension_semantics = [#tpu.dimension_semantics<parallel>], iteration_bounds = array<i64: 1>, scalar_prefetch = 0 : i64, scratch_operands = 0 : i64, tpu.core_type = #tpu.core_type<tc>, window_params = [{transform_indices = @transform_0, window_bounds = array<i64: 16, 32>}, {pipeline_mode = #tpu.pipeline_mode<synchronous>, transform_indices = @transform_1, window_bounds = array<i64: 32, 128>}, {pipeline_mode = #tpu.pipeline_mode<synchronous>, transform_indices = @transform_2, window_bounds = array<i64: 1, 128>}, {transform_indices = @transform_3, window_bounds = array<i64: 16, 128>}]} {
    %c0 = arith.constant 0 : index
    %c0_0 = arith.constant 0 : index
    %0 = vector.load %arg1[%c0, %c0_0] : memref<16x32xf32, #tpu.memory_space<vmem>>, vector<16x32xf32>
    %c0_1 = arith.constant 0 : index
    %c0_2 = arith.constant 0 : index
    %1 = vector.load %arg2[%c0_1, %c0_2] : memref<32x128xf32, #tpu.memory_space<vmem>>, vector<32x128xf32>
    %cst = arith.constant dense<0.000000e+00> : vector<16x128xf32>
    %2 = tpu.matmul %0, %1, %cst {dimension_numbers = #tpu.dot_dimension_numbers<[1], [0], [0], [1], [0, 0, 1, 1], [], []>} : vector<16x32xf32>, vector<32x128xf32>, vector<16x128xf32> -> vector<16x128xf32>
    %c0_3 = arith.constant 0 : index
    %c0_4 = arith.constant 0 : index
    %3 = vector.load %arg3[%c0_3, %c0_4] : memref<1x128xf32, #tpu.memory_space<vmem>>, vector<1x128xf32>
    %4 = vector.broadcast %3 : vector<1x128xf32> to vector<16x128xf32>
    %5 = arith.addf %2, %4 : vector<16x128xf32>
    %c0_5 = arith.constant 0 : index
    %c0_6 = arith.constant 0 : index
    %6 = vector.load %arg4[%c0_5, %c0_6] : memref<16x128xf32, #tpu.memory_space<vmem>>, vector<16x128xf32>
    tpu.vector_store %arg4[%c0_5, %c0_6], %5 {strides = array<i32>} : memref<16x128xf32, #tpu.memory_space<vmem>>, vector<16x128xf32>,
    return
  }
  func.func @transform_0(%arg0: i32) -> (i32, i32) {
    %c0_i32 = arith.constant 0 : i32
    %c0_i32_0 = arith.constant 0 : i32
    return %arg0, %c0_i32 : i32, i32
  }
  func.func @transform_1(%arg0: i32) -> (i32, i32) {
    %c0_i32 = arith.constant 0 : i32
    %c0_i32_0 = arith.constant 0 : i32
    %c0_i32_1 = arith.constant 0 : i32
    return %c0_i32, %c0_i32_0 : i32, i32
  }
  func.func @transform_2(%arg0: i32) -> (i32, i32) {
    %c0_i32 = arith.constant 0 : i32
    %c0_i32_0 = arith.constant 0 : i32
    %c0_i32_1 = arith.constant 0 : i32
    return %c0_i32, %c0_i32_0 : i32, i32
  }
  func.func @transform_3(%arg0: i32) -> (i32, i32) {
    %c0_i32 = arith.constant 0 : i32
    %c0_i32_0 = arith.constant 0 : i32
    return %arg0, %c0_i32 : i32, i32
  }
}

module attributes {stable_mosaic.version = 11 : i64} {
  func.func @_mamba_fused_kernel(%arg0: i32, %arg1: memref<1x8x64xf32, #tpu.memory_space<vmem>>, %arg2: memref<1x8x64xf32, #tpu.memory_space<vmem>>, %arg3: memref<1x64x8xf32, #tpu.memory_space<vmem>>, %arg4: memref<1x8x64xf32, #tpu.memory_space<vmem>>, %arg5: memref<16x64xf32, #tpu.memory_space<vmem>>, %arg6: memref<16x1xf32, #tpu.memory_space<vmem>>, %arg7: memref<16x1xf32, #tpu.memory_space<vmem>>, %arg8: memref<16x64xf32, #tpu.memory_space<vmem>>, %arg9: memref<16x64xf32, #tpu.memory_space<vmem>>, %arg10: memref<1x64xf32, #tpu.memory_space<vmem>>, %arg11: memref<1x1xf32, #tpu.memory_space<vmem>>, %arg12: memref<64x128xf32, #tpu.memory_space<vmem>>, %arg13: memref<1x128xf32, #tpu.memory_space<vmem>>, %arg14: memref<1x8x128xf32, #tpu.memory_space<vmem>>) attributes {dimension_semantics = [#tpu.dimension_semantics<parallel>], iteration_bounds = array<i64: 2>, scalar_prefetch = 0 : i64, scratch_operands = 0 : i64, tpu.core_type = #tpu.core_type<tc>, window_params = [{transform_indices = @transform_0, window_bounds = array<i64: 1, 8, 64>}, {transform_indices = @transform_1, window_bounds = array<i64: 1, 8, 64>}, {transform_indices = @transform_2, window_bounds = array<i64: 1, 64, 8>}, {transform_indices = @transform_3, window_bounds = array<i64: 1, 8, 64>}, {pipeline_mode = #tpu.pipeline_mode<synchronous>, transform_indices = @transform_4, window_bounds = array<i64: 16, 64>}, {pipeline_mode = #tpu.pipeline_mode<synchronous>, transform_indices = @transform_5, window_bounds = array<i64: 16, 1>}, {pipeline_mode = #tpu.pipeline_mode<synchronous>, transform_indices = @transform_6, window_bounds = array<i64: 16, 1>}, {pipeline_mode = #tpu.pipeline_mode<synchronous>, transform_indices = @transform_7, window_bounds = array<i64: 16, 64>}, {pipeline_mode = #tpu.pipeline_mode<synchronous>, transform_indices = @transform_8, window_bounds = array<i64: 16, 64>}, {pipeline_mode = #tpu.pipeline_mode<synchronous>, transform_indices = @transform_9, window_bounds = array<i64: 1, 64>}, {pipeline_mode = #tpu.pipeline_mode<synchronous>, transform_indices = @transform_10, window_bounds = array<i64: 1, 1>}, {pipeline_mode = #tpu.pipeline_mode<synchronous>, transform_indices = @transform_11, window_bounds = array<i64: 64, 128>}, {pipeline_mode = #tpu.pipeline_mode<synchronous>, transform_indices = @transform_12, window_bounds = array<i64: 1, 128>}, {transform_indices = @transform_13, window_bounds = array<i64: 1, 8, 128>}]} {
    %c0 = arith.constant 0 : index
    %c0_0 = arith.constant 0 : index
    %0 = vector.load %arg5[%c0, %c0_0] : memref<16x64xf32, #tpu.memory_space<vmem>>, vector<16x64xf32>
    %c0_1 = arith.constant 0 : index
    %c0_2 = arith.constant 0 : index
    %c0_3 = arith.constant 0 : index
    %1 = vector.load %arg3[%c0_1, %c0_2, %c0_3] : memref<1x64x8xf32, #tpu.memory_space<vmem>>, vector<1x64x8xf32>
    %2 = vector.shape_cast %1 : vector<1x64x8xf32> to vector<64x8xf32>
    %cst = arith.constant dense<0.000000e+00> : vector<16x8xf32>
    %3 = tpu.matmul %0, %2, %cst {dimension_numbers = #tpu.dot_dimension_numbers<[1], [0], [0], [1], [0, 0, 1, 1], [], []>} : vector<16x64xf32>, vector<64x8xf32>, vector<16x8xf32> -> vector<16x8xf32>
    %c0_4 = arith.constant 0 : index
    %c0_5 = arith.constant 0 : index
    %4 = vector.load %arg6[%c0_4, %c0_5] : memref<16x1xf32, #tpu.memory_space<vmem>>, vector<16x1xf32>
    %5 = vector.broadcast %4 : vector<16x1xf32> to vector<16x8xf32>
    %6 = arith.addf %3, %5 : vector<16x8xf32>
    %cst_6 = arith.constant 0.000000e+00 : f32
    %7 = vector.broadcast %cst_6 : f32 to vector<16x8xf32>
    %8 = arith.maximumf %6, %7 : vector<16x8xf32>
    %9 = math.absf %6 : vector<16x8xf32>
    %cst_7 = arith.constant 0.000000e+00 : f32
    %10 = vector.broadcast %cst_7 : f32 to vector<16x8xf32>
    %11 = arith.subf %10, %9 : vector<16x8xf32>
    %12 = math.exp %11 : vector<16x8xf32>
    %cst_8 = arith.constant 1.000000e+00 : f32
    %13 = vector.broadcast %cst_8 : f32 to vector<16x8xf32>
    %14 = arith.addf %13, %12 : vector<16x8xf32>
    %15 = math.log %14 : vector<16x8xf32>
    %16 = arith.addf %8, %15 : vector<16x8xf32>
    %cst_9 = arith.constant 0.000000e+00 : f32
    %17 = vector.broadcast %cst_9 : f32 to vector<16x8xf32>
    %18 = arith.subf %17, %16 : vector<16x8xf32>
    %c0_10 = arith.constant 0 : index
    %c0_11 = arith.constant 0 : index
    %19 = vector.load %arg7[%c0_10, %c0_11] : memref<16x1xf32, #tpu.memory_space<vmem>>, vector<16x1xf32>
    %20 = vector.broadcast %19 : vector<16x1xf32> to vector<16x8xf32>
    %21 = arith.mulf %18, %20 : vector<16x8xf32>
    %22 = math.exp %21 : vector<16x8xf32>
    %c0_12 = arith.constant 0 : index
    %c0_13 = arith.constant 0 : index
    %c0_14 = arith.constant 0 : index
    %23 = vector.load %arg2[%c0_12, %c0_13, %c0_14] : memref<1x8x64xf32, #tpu.memory_space<vmem>>, vector<1x8x64xf32>
    %24 = vector.shape_cast %23 : vector<1x8x64xf32> to vector<8x64xf32>
    %c0_15 = arith.constant 0 : index
    %c0_16 = arith.constant 0 : index
    %25 = vector.load %arg10[%c0_15, %c0_16] : memref<1x64xf32, #tpu.memory_space<vmem>>, vector<1x64xf32>
    %26 = vector.broadcast %25 : vector<1x64xf32> to vector<8x64xf32>
    %27 = arith.mulf %24, %26 : vector<8x64xf32>
    %cst_17 = arith.constant dense<0.000000e+00> : vector<8xf32>
    %28 = vector.multi_reduction <add>, %27, %cst_17 [1] : vector<8x64xf32> to vector<8xf32>
    %29 = vector.shape_cast %28 : vector<8xf32> to vector<8x1xf32>
    %c0_18 = arith.constant 0 : index
    %c0_19 = arith.constant 0 : index
    %30 = vector.load %arg11[%c0_18, %c0_19] : memref<1x1xf32, #tpu.memory_space<vmem>>, vector<1x1xf32>
    %31 = vector.broadcast %30 : vector<1x1xf32> to vector<8x1xf32>
    %32 = arith.addf %29, %31 : vector<8x1xf32>
    %c0_20 = arith.constant 0 : index
    %c0_21 = arith.constant 0 : index
    %c0_22 = arith.constant 0 : index
    %33 = vector.load %arg1[%c0_20, %c0_21, %c0_22] : memref<1x8x64xf32, #tpu.memory_space<vmem>>, vector<1x8x64xf32>
    %34 = vector.shape_cast %33 : vector<1x8x64xf32> to vector<8x64xf32>
    %c0_23 = arith.constant 0 : index
    %c0_24 = arith.constant 0 : index
    %35 = vector.load %arg8[%c0_23, %c0_24] : memref<16x64xf32, #tpu.memory_space<vmem>>, vector<16x64xf32>
    %c0_25 = arith.constant 0 : index
    %c0_26 = arith.constant 0 : index
    %36 = vector.load %arg9[%c0_25, %c0_26] : memref<16x64xf32, #tpu.memory_space<vmem>>, vector<16x64xf32>
    %37 = tpu.iota {dimensions = array<i32: 0>} : vector<8x64xi32>
    %cst_27 = arith.constant 0.000000e+00 : f32
    %38 = vector.broadcast %cst_27 : f32 to vector<16x64xf32>
    %cst_28 = arith.constant 0.000000e+00 : f32
    %39 = vector.broadcast %cst_28 : f32 to vector<8x64xf32>
    %40 = vector.extract_strided_slice %22 {offsets = [0, 0], sizes = [16, 1], strides = [1, 1]} : vector<16x8xf32> to vector<16x1xf32>
    %41 = vector.broadcast %40 : vector<16x1xf32> to vector<16x64xf32>
    %42 = arith.mulf %38, %41 : vector<16x64xf32>
    %43 = vector.extract_strided_slice %34 {offsets = [0, 0], sizes = [1, 64], strides = [1, 1]} : vector<8x64xf32> to vector<1x64xf32>
    %44 = vector.broadcast %43 : vector<1x64xf32> to vector<16x64xf32>
    %45 = arith.mulf %44, %35 : vector<16x64xf32>
    %46 = arith.addf %42, %45 : vector<16x64xf32>
    %47 = arith.mulf %46, %36 : vector<16x64xf32>
    %cst_29 = arith.constant dense<0.000000e+00> : vector<64xf32>
    %48 = vector.multi_reduction <add>, %47, %cst_29 [0] : vector<16x64xf32> to vector<64xf32>
    %49 = vector.shape_cast %48 : vector<64xf32> to vector<1x64xf32>
    %c0_i32 = arith.constant 0 : i32
    %50 = vector.broadcast %c0_i32 : i32 to vector<8x64xi32>
    %51 = arith.cmpi eq, %37, %50 : vector<8x64xi32>
    %52 = vector.shape_cast %49 : vector<1x64xf32> to vector<1x64xf32>
    %53 = vector.broadcast %52 : vector<1x64xf32> to vector<8x64xf32>
    %54 = arith.select %51, %53, %39 : vector<8x64xi1>, vector<8x64xf32>
    %55 = vector.extract_strided_slice %22 {offsets = [0, 1], sizes = [16, 1], strides = [1, 1]} : vector<16x8xf32> to vector<16x1xf32>
    %56 = vector.broadcast %55 : vector<16x1xf32> to vector<16x64xf32>
    %57 = arith.mulf %46, %56 : vector<16x64xf32>
    %58 = vector.extract_strided_slice %34 {offsets = [1, 0], sizes = [1, 64], strides = [1, 1]} : vector<8x64xf32> to vector<1x64xf32>
    %59 = vector.broadcast %58 : vector<1x64xf32> to vector<16x64xf32>
    %60 = arith.mulf %59, %35 : vector<16x64xf32>
    %61 = arith.addf %57, %60 : vector<16x64xf32>
    %62 = arith.mulf %61, %36 : vector<16x64xf32>
    %cst_30 = arith.constant dense<0.000000e+00> : vector<64xf32>
    %63 = vector.multi_reduction <add>, %62, %cst_30 [0] : vector<16x64xf32> to vector<64xf32>
    %64 = vector.shape_cast %63 : vector<64xf32> to vector<1x64xf32>
    %c1_i32 = arith.constant 1 : i32
    %65 = vector.broadcast %c1_i32 : i32 to vector<8x64xi32>
    %66 = arith.cmpi eq, %37, %65 : vector<8x64xi32>
    %67 = vector.shape_cast %64 : vector<1x64xf32> to vector<1x64xf32>
    %68 = vector.broadcast %67 : vector<1x64xf32> to vector<8x64xf32>
    %69 = arith.select %66, %68, %54 : vector<8x64xi1>, vector<8x64xf32>
    %70 = vector.extract_strided_slice %22 {offsets = [0, 2], sizes = [16, 1], strides = [1, 1]} : vector<16x8xf32> to vector<16x1xf32>
    %71 = vector.broadcast %70 : vector<16x1xf32> to vector<16x64xf32>
    %72 = arith.mulf %61, %71 : vector<16x64xf32>
    %73 = vector.extract_strided_slice %34 {offsets = [2, 0], sizes = [1, 64], strides = [1, 1]} : vector<8x64xf32> to vector<1x64xf32>
    %74 = vector.broadcast %73 : vector<1x64xf32> to vector<16x64xf32>
    %75 = arith.mulf %74, %35 : vector<16x64xf32>
    %76 = arith.addf %72, %75 : vector<16x64xf32>
    %77 = arith.mulf %76, %36 : vector<16x64xf32>
    %cst_31 = arith.constant dense<0.000000e+00> : vector<64xf32>
    %78 = vector.multi_reduction <add>, %77, %cst_31 [0] : vector<16x64xf32> to vector<64xf32>
    %79 = vector.shape_cast %78 : vector<64xf32> to vector<1x64xf32>
    %c2_i32 = arith.constant 2 : i32
    %80 = vector.broadcast %c2_i32 : i32 to vector<8x64xi32>
    %81 = arith.cmpi eq, %37, %80 : vector<8x64xi32>
    %82 = vector.shape_cast %79 : vector<1x64xf32> to vector<1x64xf32>
    %83 = vector.broadcast %82 : vector<1x64xf32> to vector<8x64xf32>
    %84 = arith.select %81, %83, %69 : vector<8x64xi1>, vector<8x64xf32>
    %85 = vector.extract_strided_slice %22 {offsets = [0, 3], sizes = [16, 1], strides = [1, 1]} : vector<16x8xf32> to vector<16x1xf32>
    %86 = vector.broadcast %85 : vector<16x1xf32> to vector<16x64xf32>
    %87 = arith.mulf %76, %86 : vector<16x64xf32>
    %88 = vector.extract_strided_slice %34 {offsets = [3, 0], sizes = [1, 64], strides = [1, 1]} : vector<8x64xf32> to vector<1x64xf32>
    %89 = vector.broadcast %88 : vector<1x64xf32> to vector<16x64xf32>
    %90 = arith.mulf %89, %35 : vector<16x64xf32>
    %91 = arith.addf %87, %90 : vector<16x64xf32>
    %92 = arith.mulf %91, %36 : vector<16x64xf32>
    %cst_32 = arith.constant dense<0.000000e+00> : vector<64xf32>
    %93 = vector.multi_reduction <add>, %92, %cst_32 [0] : vector<16x64xf32> to vector<64xf32>
    %94 = vector.shape_cast %93 : vector<64xf32> to vector<1x64xf32>
    %c3_i32 = arith.constant 3 : i32
    %95 = vector.broadcast %c3_i32 : i32 to vector<8x64xi32>
    %96 = arith.cmpi eq, %37, %95 : vector<8x64xi32>
    %97 = vector.shape_cast %94 : vector<1x64xf32> to vector<1x64xf32>
    %98 = vector.broadcast %97 : vector<1x64xf32> to vector<8x64xf32>
    %99 = arith.select %96, %98, %84 : vector<8x64xi1>, vector<8x64xf32>
    %100 = vector.extract_strided_slice %22 {offsets = [0, 4], sizes = [16, 1], strides = [1, 1]} : vector<16x8xf32> to vector<16x1xf32>
    %101 = vector.broadcast %100 : vector<16x1xf32> to vector<16x64xf32>
    %102 = arith.mulf %91, %101 : vector<16x64xf32>
    %103 = vector.extract_strided_slice %34 {offsets = [4, 0], sizes = [1, 64], strides = [1, 1]} : vector<8x64xf32> to vector<1x64xf32>
    %104 = vector.broadcast %103 : vector<1x64xf32> to vector<16x64xf32>
    %105 = arith.mulf %104, %35 : vector<16x64xf32>
    %106 = arith.addf %102, %105 : vector<16x64xf32>
    %107 = arith.mulf %106, %36 : vector<16x64xf32>
    %cst_33 = arith.constant dense<0.000000e+00> : vector<64xf32>
    %108 = vector.multi_reduction <add>, %107, %cst_33 [0] : vector<16x64xf32> to vector<64xf32>
    %109 = vector.shape_cast %108 : vector<64xf32> to vector<1x64xf32>
    %c4_i32 = arith.constant 4 : i32
    %110 = vector.broadcast %c4_i32 : i32 to vector<8x64xi32>
    %111 = arith.cmpi eq, %37, %110 : vector<8x64xi32>
    %112 = vector.shape_cast %109 : vector<1x64xf32> to vector<1x64xf32>
    %113 = vector.broadcast %112 : vector<1x64xf32> to vector<8x64xf32>
    %114 = arith.select %111, %113, %99 : vector<8x64xi1>, vector<8x64xf32>
    %115 = vector.extract_strided_slice %22 {offsets = [0, 5], sizes = [16, 1], strides = [1, 1]} : vector<16x8xf32> to vector<16x1xf32>
    %116 = vector.broadcast %115 : vector<16x1xf32> to vector<16x64xf32>
    %117 = arith.mulf %106, %116 : vector<16x64xf32>
    %118 = vector.extract_strided_slice %34 {offsets = [5, 0], sizes = [1, 64], strides = [1, 1]} : vector<8x64xf32> to vector<1x64xf32>
    %119 = vector.broadcast %118 : vector<1x64xf32> to vector<16x64xf32>
    %120 = arith.mulf %119, %35 : vector<16x64xf32>
    %121 = arith.addf %117, %120 : vector<16x64xf32>
    %122 = arith.mulf %121, %36 : vector<16x64xf32>
    %cst_34 = arith.constant dense<0.000000e+00> : vector<64xf32>
    %123 = vector.multi_reduction <add>, %122, %cst_34 [0] : vector<16x64xf32> to vector<64xf32>
    %124 = vector.shape_cast %123 : vector<64xf32> to vector<1x64xf32>
    %c5_i32 = arith.constant 5 : i32
    %125 = vector.broadcast %c5_i32 : i32 to vector<8x64xi32>
    %126 = arith.cmpi eq, %37, %125 : vector<8x64xi32>
    %127 = vector.shape_cast %124 : vector<1x64xf32> to vector<1x64xf32>
    %128 = vector.broadcast %127 : vector<1x64xf32> to vector<8x64xf32>
    %129 = arith.select %126, %128, %114 : vector<8x64xi1>, vector<8x64xf32>
    %130 = vector.extract_strided_slice %22 {offsets = [0, 6], sizes = [16, 1], strides = [1, 1]} : vector<16x8xf32> to vector<16x1xf32>
    %131 = vector.broadcast %130 : vector<16x1xf32> to vector<16x64xf32>
    %132 = arith.mulf %121, %131 : vector<16x64xf32>
    %133 = vector.extract_strided_slice %34 {offsets = [6, 0], sizes = [1, 64], strides = [1, 1]} : vector<8x64xf32> to vector<1x64xf32>
    %134 = vector.broadcast %133 : vector<1x64xf32> to vector<16x64xf32>
    %135 = arith.mulf %134, %35 : vector<16x64xf32>
    %136 = arith.addf %132, %135 : vector<16x64xf32>
    %137 = arith.mulf %136, %36 : vector<16x64xf32>
    %cst_35 = arith.constant dense<0.000000e+00> : vector<64xf32>
    %138 = vector.multi_reduction <add>, %137, %cst_35 [0] : vector<16x64xf32> to vector<64xf32>
    %139 = vector.shape_cast %138 : vector<64xf32> to vector<1x64xf32>
    %c6_i32 = arith.constant 6 : i32
    %140 = vector.broadcast %c6_i32 : i32 to vector<8x64xi32>
    %141 = arith.cmpi eq, %37, %140 : vector<8x64xi32>
    %142 = vector.shape_cast %139 : vector<1x64xf32> to vector<1x64xf32>
    %143 = vector.broadcast %142 : vector<1x64xf32> to vector<8x64xf32>
    %144 = arith.select %141, %143, %129 : vector<8x64xi1>, vector<8x64xf32>
    %145 = vector.extract_strided_slice %22 {offsets = [0, 7], sizes = [16, 1], strides = [1, 1]} : vector<16x8xf32> to vector<16x1xf32>
    %146 = vector.broadcast %145 : vector<16x1xf32> to vector<16x64xf32>
    %147 = arith.mulf %136, %146 : vector<16x64xf32>
    %148 = vector.extract_strided_slice %34 {offsets = [7, 0], sizes = [1, 64], strides = [1, 1]} : vector<8x64xf32> to vector<1x64xf32>
    %149 = vector.broadcast %148 : vector<1x64xf32> to vector<16x64xf32>
    %150 = arith.mulf %149, %35 : vector<16x64xf32>
    %151 = arith.addf %147, %150 : vector<16x64xf32>
    %152 = arith.mulf %151, %36 : vector<16x64xf32>
    %cst_36 = arith.constant dense<0.000000e+00> : vector<64xf32>
    %153 = vector.multi_reduction <add>, %152, %cst_36 [0] : vector<16x64xf32> to vector<64xf32>
    %154 = vector.shape_cast %153 : vector<64xf32> to vector<1x64xf32>
    %c7_i32 = arith.constant 7 : i32
    %155 = vector.broadcast %c7_i32 : i32 to vector<8x64xi32>
    %156 = arith.cmpi eq, %37, %155 : vector<8x64xi32>
    %157 = vector.shape_cast %154 : vector<1x64xf32> to vector<1x64xf32>
    %158 = vector.broadcast %157 : vector<1x64xf32> to vector<8x64xf32>
    %159 = arith.select %156, %158, %144 : vector<8x64xi1>, vector<8x64xf32>
    %cst_37 = arith.constant 0.000000e+00 : f32
    %160 = vector.broadcast %cst_37 : f32 to vector<8x1xf32>
    %161 = arith.subf %160, %32 : vector<8x1xf32>
    %162 = math.exp %161 : vector<8x1xf32>
    %cst_38 = arith.constant 1.000000e+00 : f32
    %163 = vector.broadcast %cst_38 : f32 to vector<8x1xf32>
    %164 = arith.addf %163, %162 : vector<8x1xf32>
    %cst_39 = arith.constant 1.000000e+00 : f32
    %165 = vector.broadcast %cst_39 : f32 to vector<8x1xf32>
    %166 = arith.divf %165, %164 : vector<8x1xf32>
    %167 = arith.mulf %32, %166 : vector<8x1xf32>
    %168 = vector.broadcast %167 : vector<8x1xf32> to vector<8x64xf32>
    %169 = arith.mulf %159, %168 : vector<8x64xf32>
    %c0_40 = arith.constant 0 : index
    %c0_41 = arith.constant 0 : index
    %c0_42 = arith.constant 0 : index
    %170 = vector.load %arg4[%c0_40, %c0_41, %c0_42] : memref<1x8x64xf32, #tpu.memory_space<vmem>>, vector<1x8x64xf32>
    %171 = vector.shape_cast %170 : vector<1x8x64xf32> to vector<8x64xf32>
    %172 = arith.addf %169, %171 : vector<8x64xf32>
    %c0_43 = arith.constant 0 : index
    %c0_44 = arith.constant 0 : index
    %173 = vector.load %arg12[%c0_43, %c0_44] : memref<64x128xf32, #tpu.memory_space<vmem>>, vector<64x128xf32>
    %cst_45 = arith.constant dense<0.000000e+00> : vector<8x128xf32>
    %174 = tpu.matmul %172, %173, %cst_45 {dimension_numbers = #tpu.dot_dimension_numbers<[1], [0], [0], [1], [0, 0, 1, 1], [], []>} : vector<8x64xf32>, vector<64x128xf32>, vector<8x128xf32> -> vector<8x128xf32>
    %c0_46 = arith.constant 0 : index
    %c0_47 = arith.constant 0 : index
    %175 = vector.load %arg13[%c0_46, %c0_47] : memref<1x128xf32, #tpu.memory_space<vmem>>, vector<1x128xf32>
    %176 = vector.broadcast %175 : vector<1x128xf32> to vector<8x128xf32>
    %177 = arith.addf %174, %176 : vector<8x128xf32>
    %c0_48 = arith.constant 0 : index
    %c0_49 = arith.constant 0 : index
    %c0_50 = arith.constant 0 : index
    %178 = vector.load %arg14[%c0_48, %c0_49, %c0_50] : memref<1x8x128xf32, #tpu.memory_space<vmem>>, vector<1x8x128xf32>
    %179 = vector.shape_cast %178 : vector<1x8x128xf32> to vector<8x128xf32>
    %180 = vector.shape_cast %177 : vector<8x128xf32> to vector<1x8x128xf32>
    tpu.vector_store %arg14[%c0_48, %c0_49, %c0_50], %180 {strides = array<i32>} : memref<1x8x128xf32, #tpu.memory_space<vmem>>, vector<1x8x128xf32>,
    return
  }
  func.func @transform_0(%arg0: i32) -> (i32, i32, i32) {
    %c0_i32 = arith.constant 0 : i32
    %c0_i32_0 = arith.constant 0 : i32
    %c0_i32_1 = arith.constant 0 : i32
    return %arg0, %c0_i32, %c0_i32_0 : i32, i32, i32
  }
  func.func @transform_1(%arg0: i32) -> (i32, i32, i32) {
    %c0_i32 = arith.constant 0 : i32
    %c0_i32_0 = arith.constant 0 : i32
    %c0_i32_1 = arith.constant 0 : i32
    return %arg0, %c0_i32, %c0_i32_0 : i32, i32, i32
  }
  func.func @transform_2(%arg0: i32) -> (i32, i32, i32) {
    %c0_i32 = arith.constant 0 : i32
    %c0_i32_0 = arith.constant 0 : i32
    %c0_i32_1 = arith.constant 0 : i32
    return %arg0, %c0_i32, %c0_i32_0 : i32, i32, i32
  }
  func.func @transform_3(%arg0: i32) -> (i32, i32, i32) {
    %c0_i32 = arith.constant 0 : i32
    %c0_i32_0 = arith.constant 0 : i32
    %c0_i32_1 = arith.constant 0 : i32
    return %arg0, %c0_i32, %c0_i32_0 : i32, i32, i32
  }
  func.func @transform_4(%arg0: i32) -> (i32, i32) {
    %c0_i32 = arith.constant 0 : i32
    %c0_i32_0 = arith.constant 0 : i32
    %c0_i32_1 = arith.constant 0 : i32
    return %c0_i32, %c0_i32_0 : i32, i32
  }
  func.func @transform_5(%arg0: i32) -> (i32, i32) {
    %c0_i32 = arith.constant 0 : i32
    %c0_i32_0 = arith.constant 0 : i32
    %c0_i32_1 = arith.constant 0 : i32
    return %c0_i32, %c0_i32_0 : i32, i32
  }
  func.func @transform_6(%arg0: i32) -> (i32, i32) {
    %c0_i32 = arith.constant 0 : i32
    %c0_i32_0 = arith.constant 0 : i32
    %c0_i32_1 = arith.constant 0 : i32
    return %c0_i32, %c0_i32_0 : i32, i32
  }
  func.func @transform_7(%arg0: i32) -> (i32, i32) {
    %c0_i32 = arith.constant 0 : i32
    %c0_i32_0 = arith.constant 0 : i32
    %c0_i32_1 = arith.constant 0 : i32
    return %c0_i32, %c0_i32_0 : i32, i32
  }
  func.func @transform_8(%arg0: i32) -> (i32, i32) {
    %c0_i32 = arith.constant 0 : i32
    %c0_i32_0 = arith.constant 0 : i32
    %c0_i32_1 = arith.constant 0 : i32
    return %c0_i32, %c0_i32_0 : i32, i32
  }
  func.func @transform_9(%arg0: i32) -> (i32, i32) {
    %c0_i32 = arith.constant 0 : i32
    %c0_i32_0 = arith.constant 0 : i32
    %c0_i32_1 = arith.constant 0 : i32
    return %c0_i32, %c0_i32_0 : i32, i32
  }
  func.func @transform_10(%arg0: i32) -> (i32, i32) {
    %c0_i32 = arith.constant 0 : i32
    %c0_i32_0 = arith.constant 0 : i32
    %c0_i32_1 = arith.constant 0 : i32
    return %c0_i32, %c0_i32_0 : i32, i32
  }
  func.func @transform_11(%arg0: i32) -> (i32, i32) {
    %c0_i32 = arith.constant 0 : i32
    %c0_i32_0 = arith.constant 0 : i32
    %c0_i32_1 = arith.constant 0 : i32
    return %c0_i32, %c0_i32_0 : i32, i32
  }
  func.func @transform_12(%arg0: i32) -> (i32, i32) {
    %c0_i32 = arith.constant 0 : i32
    %c0_i32_0 = arith.constant 0 : i32
    %c0_i32_1 = arith.constant 0 : i32
    return %c0_i32, %c0_i32_0 : i32, i32
  }
  func.func @transform_13(%arg0: i32) -> (i32, i32, i32) {
    %c0_i32 = arith.constant 0 : i32
    %c0_i32_0 = arith.constant 0 : i32
    %c0_i32_1 = arith.constant 0 : i32
    return %arg0, %c0_i32, %c0_i32_0 : i32, i32, i32
  }
}

</mosaic_0001>

<llo_original>
// kernel: mamba_block_forward.2
$region0: #{mamba_block_forward.2}
  #allocation0 [shape = 'u32[]', space=smem, size = 0x4, offset = 0x4, fixed_abs, tag = 'smem constant byte address 0x4 - core index']
  #allocation1 [shape = 'u32[144,128]{1,0:T(1,128)}', space=vmem, size = 0x12000, scoped, tag = 'internal scratch']
  %s0 = inlined_call_operand.vmem [shape: f32[16,32], index: 0, kind: input, shape index: {}]
  %s1 = inlined_call_operand.vmem [shape: f32[32,128], index: 1, kind: input, shape index: {}]
  %s2 = inlined_call_operand.hbm [shape: f32[1,128], index: 2, kind: input, shape index: {}]
  %s3 = inlined_call_operand.vmem [shape: f32[16,128], index: 3, kind: output, shape index: {}]
  %s4 = sld [smem:[#allocation0]]
  $region26: #{mamba_block_forward.2} parent=0
    _
  %s6 = ssub.s32 1, %s4
  %s7 = scalar_select 0, %s6, %s4
  $region1: #{mamba_block_forward.2} parent=0
    #allocation2 [shape = 'u8[512]{0}', space=vmem, size = 0x400, scoped, tag = 'input window, operand 2, single buffered']
    #allocation3 [shape = 's32[1]{0}', space=sflag, size = 0x4, scoped, tag = 'scoped memory for mamba_block_forward.2']
    %8 = vsyncpa [#allocation3], 0
    // Predicated region
    $region2: #{mamba_block_forward.2} parent=1 // pred_check
      _
    $region3: #{mamba_block_forward.2} parent=1 // pred_check_branch
      %10 = sbr.rel (0) target = $region5
    $region4: #{mamba_block_forward.2} parent=1 // pred_region
      _
    $region5: #{mamba_block_forward.2} parent=1 // pred_fallthru
      _
    // Predicated region
    $region6: #{mamba_block_forward.2} parent=1 // pred_check
      _
    $region7: #{mamba_block_forward.2} parent=1 // pred_check_branch
      %12 = sbr.rel (0) target = $region9
    $region8: #{mamba_block_forward.2} parent=1 // pred_region
      _
    $region9: #{mamba_block_forward.2} parent=1 // pred_fallthru
      _
    // Predicated region
    $region10: #{mamba_block_forward.2} parent=1 // pred_check
      _
    $region11: #{mamba_block_forward.2} parent=1 // pred_check_branch
      %14 = sbr.rel (0) target = $region13
    $region12: #{mamba_block_forward.2} parent=1 // pred_region
      %s16 = ssub.s32 16, 16
      %17 = vsyncadd [#allocation3], %s16
      %s19 = sshll.u32 [#allocation2], 4
      %s20 = int_to_ptr.vmem [resolvable:$true] %s19
      %22 = dma.hbm_to_vmem [thread:$0]  %s2, 16, %s20, [#allocation3]
    $region13: #{mamba_block_forward.2} parent=1 // pred_fallthru
      _
    // Predicated region
    $region14: #{mamba_block_forward.2} parent=1 // pred_check
      _
    $region15: #{mamba_block_forward.2} parent=1 // pred_check_branch
      %24 = sbr.rel (0) target = $region17
    $region16: #{mamba_block_forward.2} parent=1 // pred_region
      %25 = dma.done [#allocation3], 16
    $region17: #{mamba_block_forward.2} parent=1 // pred_fallthru
      _
    %v26 = vld [vmem:[%s0] sm:$0xff]
    %v27 = vld [vmem:[%s0 + $0x8] sm:$0xff]
    %v28 = vld [vmem:[%s1] sm:$0xff]
    %v29 = vld [vmem:[%s1 + $0x8] sm:$0xff]
    %v30 = vld [vmem:[%s1 + $0x10] sm:$0xff]
    %v31 = vld [vmem:[%s1 + $0x18] sm:$0xff]
    %v32 = vld [vmem:[#allocation2] sm:$0x1]
    %v34 = vlaneseq
    %v35 = vshrl.u32 %v34, 7
    %v36 = vsub.s32 0, %v35
    %v37 = vrot.slane %v32, %v36
    %vm39 = vcmask 261120
    %v41 = vsel %vm39, %v26, 0
    %v44 = vsel %vm39, %v27, 0
    %46 = vmatprep.subr.mxu0 0.0
    %47 = vmatpush1.msra.mxu0 0.0
    %48 = vmatprep.subr.mxu0 0.0
    %49 = vmatpush1.msra.mxu0 0.0
    %50 = vmatprep.subr.mxu0 0.0
    %51 = vmatpush1.msra.mxu0 0.0
    %52 = vmatprep.subr.mxu0 0.0
    %53 = vmatpush1.msra.mxu0 0.0
    %54 = vmatprep.subr.mxu0 0.0
    %55 = vmatpush1.msra.mxu0 0.0
    %56 = vmatprep.subr.mxu0 0.0
    %57 = vmatpush1.msra.mxu0 0.0
    %58 = vmatprep.subr.mxu0 0.0
    %59 = vmatpush1.msra.mxu0 0.0
    %60 = vmatprep.subr.mxu0 0.0
    %61 = vmatpush1.msra.mxu0 0.0
    %62 = vmatprep.subr.mxu0 0.0
    %63 = vmatpush1.msra.mxu0 0.0
    %64 = vmatprep.subr.mxu0 0.0
    %65 = vmatpush1.msra.mxu0 0.0
    %66 = vmatprep.subr.mxu0 0.0
    %67 = vmatpush1.msra.mxu0 0.0
    %68 = vmatprep.subr.mxu0 0.0
    %69 = vmatpush1.msra.mxu0 0.0
    %70 = vmatprep.subr.mxu0 0.0
    %71 = vmatpush1.msra.mxu0 %v31
    %72 = vmatprep.subr.mxu0 0.0
    %73 = vmatpush1.msra.mxu0 %v30
    %74 = vmatprep.subr.mxu0 0.0
    %75 = vmatpush1.msra.mxu0 %v29
    %76 = vmatprep.subr.mxu0 0.0
    %77 = vmatpush1.msra.mxu0 %v28
    %78 = vmatprep.subr.mxu0 0.0
    %79 = vmatpush2.msra.mxu0 0.0
    %80 = vmatprep.subr.mxu0 0.0
    %81 = vmatpush2.msra.mxu0 0.0
    %82 = vmatprep.subr.mxu0 0.0
    %83 = vmatpush2.msra.mxu0 0.0
    %84 = vmatprep.subr.mxu0 0.0
    %85 = vmatpush2.msra.mxu0 0.0
    %86 = vmatprep.subr.mxu0 0.0
    %87 = vmatpush2.msra.mxu0 0.0
    %88 = vmatprep.subr.mxu0 0.0
    %89 = vmatpush2.msra.mxu0 0.0
    %90 = vmatprep.subr.mxu0 0.0
    %91 = vmatpush2.msra.mxu0 0.0
    %92 = vmatprep.subr.mxu0 0.0
    %93 = vmatpush2.msra.mxu0 0.0
    %94 = vmatprep.subr.mxu0 0.0
    %95 = vmatpush2.msra.mxu0 0.0
    %96 = vmatprep.subr.mxu0 0.0
    %97 = vmatpush2.msra.mxu0 0.0
    %98 = vmatprep.subr.mxu0 0.0
    %99 = vmatpush2.msra.mxu0 0.0
    %100 = vmatprep.subr.mxu0 0.0
    %101 = vmatpush2.msra.mxu0 0.0
    %102 = vmatprep.subr.mxu0 0.0
    %103 = vmatpush2.msra.mxu0 0.0
    %104 = vmatprep.subr.mxu0 0.0
    %105 = vmatpush2.msra.mxu0 0.0
    %106 = vmatprep.subr.mxu0 0.0
    %107 = vmatpush2.msra.mxu0 0.0
    %108 = vmatprep.subr.mxu0 0.0
    %109 = vmatpush2.msra.mxu0 0.0
    %110 = vmatprep.mubr.f32.mxu0 0.0
    %111 = vmatmul.mubr.f32.gmra.mxu0 %v41
    %v112 = vpop.f32.mrf.mxu0
    %v113 = vadd.f32 %v37, %v112
    %v114 = vpop.f32.mrf.mxu0
    %115 = vmatprep.mubr.f32.mxu0 0.0
    %116 = vmatmul.mubr.f32.gmra.mxu0 %v44
    %v117 = vpop.f32.mrf.mxu0
    %v118 = vadd.f32 %v37, %v117
    %v119 = vpop.f32.mrf.mxu0
    %120 = vdwg.mxu0
    %121 = vst [vmem:[%s3] sm:$0xff] %v113
    %122 = vst [vmem:[%s3 + $0x8] sm:$0xff] %v118
    // Predicated region
    $region18: #{mamba_block_forward.2} parent=1 // pred_check
      _
    $region19: #{mamba_block_forward.2} parent=1 // pred_check_branch
      %124 = sbr.rel (0) target = $region21
    $region20: #{mamba_block_forward.2} parent=1 // pred_region
      _
    $region21: #{mamba_block_forward.2} parent=1 // pred_fallthru
      _
    // Predicated region
    $region22: #{mamba_block_forward.2} parent=1 // pred_check
      _
    $region23: #{mamba_block_forward.2} parent=1 // pred_check_branch
      %126 = sbr.rel (0) target = $region25
    $region24: #{mamba_block_forward.2} parent=1 // pred_region
      _
    $region25: #{mamba_block_forward.2} parent=1 // pred_fallthru
      _
    %127 = vsyncpa [#allocation3], 1

// kernel: mamba_block_forward.3
$region0: #{mamba_block_forward.3}
  #allocation0 [shape = 'u32[]', space=smem, size = 0x4, offset = 0x4, fixed_abs, tag = 'smem constant byte address 0x4 - core index']
  #allocation1 [shape = 'u32[144,128]{1,0:T(1,128)}', space=vmem, size = 0x12000, scoped, tag = 'internal scratch']
  #allocation2 [shape = 'f32[1,1]{1,0:T(1,128)S(1)}', space=vmem, size = 0x200, scoped, tag = 'scoped memory for mamba_block_forward.3']
  %s0 = inlined_call_operand.vmem [shape: f32[2,8,64], index: 0, kind: input, shape index: {}]
  %s1 = inlined_call_operand.vmem [shape: f32[2,8,64], index: 1, kind: input, shape index: {}]
  %s2 = inlined_call_operand.vmem [shape: f32[2,64,8], index: 2, kind: input, shape index: {}]
  %s3 = inlined_call_operand.vmem [shape: f32[2,8,64], index: 3, kind: input, shape index: {}]
  %s4 = inlined_call_operand.vmem [shape: f32[16,64], index: 4, kind: input, shape index: {}]
  %s5 = inlined_call_operand.vmem [shape: f32[16,1], index: 5, kind: input, shape index: {}]
  %s6 = inlined_call_operand.vmem [shape: f32[16,1], index: 6, kind: input, shape index: {}]
  %s7 = inlined_call_operand.vmem [shape: f32[16,64], index: 7, kind: input, shape index: {}]
  %s8 = inlined_call_operand.vmem [shape: f32[16,64], index: 8, kind: input, shape index: {}]
  %s9 = inlined_call_operand.vmem [shape: f32[1,64], index: 9, kind: input, shape index: {}]
  %s10 = inlined_call_operand.<no memory space> [shape: f32[1,1], index: 10, kind: input, shape index: {}]
  %s11 = inlined_call_operand.vmem [shape: f32[64,128], index: 11, kind: input, shape index: {}]
  %s12 = inlined_call_operand.vmem [shape: f32[1,128], index: 12, kind: input, shape index: {}]
  %s13 = inlined_call_operand.hbm [shape: f32[2,8,128], index: 13, kind: output, shape index: {}]
  %s14 = sld [smem:[#allocation0]]
  $region85: #{mamba_block_forward.3} parent=0
    _
  %s16 = ssub.s32 1, %s14
  %s17 = scalar_select 0, %s16, %s14
  %v18 = vstv %s10
  %19 = vst [vmem:[#allocation2] sm:$0x1] %v18
  $region1: #{mamba_block_forward.3} parent=0
    #allocation3 [shape = 'u8[8192]{0}', space=vmem, size = 0x2000, scoped, tag = 'output window, operand 0']
    #allocation4 [shape = 's32[2]{0}', space=sflag, size = 0x8, scoped, tag = 'scoped memory for mamba_block_forward.3']
    %20 = vsyncpa [#allocation4], 0
    %s21 = scalar_lea.sflag [#allocation4], 1
    %22 = vsyncpa %s21, 0
    loop: start=0, step=1, limit=4
    $region2: #{mamba_block_forward.3} parent=1 // loop_pre_header
      _
    $region3: #{mamba_block_forward.3} parent=1 // loop_header
      %s24 = sphi 0, %s28
      %p25 = scmp.ge.s32.totalorder %s24, 4
      %s34 = sphi 0, %s36
      %s37 = sphi 0, %s34
      %s38 = sphi 0, %s37
      %s54 = sphi 0, %s38
      %s60 = sphi 0, %s62
      %s63 = sphi 0, %s60
      %s64 = sphi 0, %s63
      %s80 = sphi 0, %s64
      %s86 = sphi 0, %s88
      %s89 = sphi 0, %s86
      %s90 = sphi 0, %s89
      %s106 = sphi 0, %s90
      %s112 = sphi 0, %s114
      %s115 = sphi 0, %s112
      %s116 = sphi 0, %s115
      %s132 = sphi 0, %s116
      %s136 = sphi 0, %s136
      %s138 = sphi 0, %s136
      %s139 = sphi 0, %s138
      %s153 = sphi 0, %s139
      %s157 = sphi 0, %s157
      %s159 = sphi 0, %s157
      %s160 = sphi 0, %s159
      %s174 = sphi 0, %s160
      %s178 = sphi 0, %s178
      %s180 = sphi 0, %s178
      %s181 = sphi 0, %s180
      %s195 = sphi 0, %s181
      %s199 = sphi 0, %s199
      %s201 = sphi 0, %s199
      %s202 = sphi 0, %s201
      %s216 = sphi 0, %s202
      %s220 = sphi 0, %s220
      %s222 = sphi 0, %s220
      %s223 = sphi 0, %s222
      %s237 = sphi 0, %s223
      %s241 = sphi 0, %s241
      %s243 = sphi 0, %s241
      %s244 = sphi 0, %s243
      %s258 = sphi 0, %s244
      %s262 = sphi 0, %s262
      %s264 = sphi 0, %s262
      %s265 = sphi 0, %s264
      %s279 = sphi 0, %s265
      %s283 = sphi 0, %s283
      %s285 = sphi 0, %s283
      %s286 = sphi 0, %s285
      %s300 = sphi 0, %s286
      %s304 = sphi 0, %s304
      %s306 = sphi 0, %s304
      %s307 = sphi 0, %s306
      %s321 = sphi 0, %s307
      %s327 = sphi 0, %s329
      %s330 = sphi 0, %s327
      %s331 = sphi 0, %s330
      %s347 = sphi 0, %s331
    $region4: #{mamba_block_forward.3} parent=1 // loop_header_branch
      %27 = sbr.rel (%p25) target = $region8
    $region5: #{mamba_block_forward.3} parent=1 // loop_body
      %s29 = ssub.s32 %s24, 1
      %s30 = ssub.s32 %s24, 2
      %s31 = sadd.s32 %s24, 1
      %s32 = ssub.s32 %s24, %s31
      %p33 = scmp.eq.s32.totalorder %s32, 0
      %s35 = sadd.s32 %s34, 1
      %s36 = scalar_select %p33, %s34, %s35
      %p39 = pneg %p33
      %p40 = scmp.eq.s32.totalorder %s24, 1
      %p41 = por %p39, %p40
      %p42 = scmp.ne.s32.totalorder %s34, %s37
      %p43 = scmp.eq.s32.totalorder %s24, 0
      %p44 = por %p42, %p43
      %p45 = scmp.ne.s32.totalorder %s34, %s37
      %p46 = scmp.eq.s32.totalorder %s29, 1
      %p47 = por %p45, %p46
      %p48 = scmp.ne.s32.totalorder %s37, %s38
      %p49 = scmp.eq.s32.totalorder %s29, 0
      %p50 = por %p48, %p49
      %p51 = scmp.ne.s32.totalorder %s37, %s38
      %p52 = scmp.eq.s32.totalorder %s30, 1
      %p53 = por %p51, %p52
      %p55 = scmp.ne.s32.totalorder %s38, %s54
      %p56 = scmp.eq.s32.totalorder %s30, 0
      %p57 = por %p55, %p56
      %s58 = ssub.s32 %s24, %s31
      %p59 = scmp.eq.s32.totalorder %s58, 0
      %s61 = sadd.s32 %s60, 1
      %s62 = scalar_select %p59, %s60, %s61
      %p65 = pneg %p59
      %p66 = scmp.eq.s32.totalorder %s24, 1
      %p67 = por %p65, %p66
      %p68 = scmp.ne.s32.totalorder %s60, %s63
      %p69 = scmp.eq.s32.totalorder %s24, 0
      %p70 = por %p68, %p69
      %p71 = scmp.ne.s32.totalorder %s60, %s63
      %p72 = scmp.eq.s32.totalorder %s29, 1
      %p73 = por %p71, %p72
      %p74 = scmp.ne.s32.totalorder %s63, %s64
      %p75 = scmp.eq.s32.totalorder %s29, 0
      %p76 = por %p74, %p75
      %p77 = scmp.ne.s32.totalorder %s63, %s64
      %p78 = scmp.eq.s32.totalorder %s30, 1
      %p79 = por %p77, %p78
      %p81 = scmp.ne.s32.totalorder %s64, %s80
      %p82 = scmp.eq.s32.totalorder %s30, 0
      %p83 = por %p81, %p82
      %s84 = ssub.s32 %s24, %s31
      %p85 = scmp.eq.s32.totalorder %s84, 0
      %s87 = sadd.s32 %s86, 1
      %s88 = scalar_select %p85, %s86, %s87
      %p91 = pneg %p85
      %p92 = scmp.eq.s32.totalorder %s24, 1
      %p93 = por %p91, %p92
      %p94 = scmp.ne.s32.totalorder %s86, %s89
      %p95 = scmp.eq.s32.totalorder %s24, 0
      %p96 = por %p94, %p95
      %p97 = scmp.ne.s32.totalorder %s86, %s89
      %p98 = scmp.eq.s32.totalorder %s29, 1
      %p99 = por %p97, %p98
      %p100 = scmp.ne.s32.totalorder %s89, %s90
      %p101 = scmp.eq.s32.totalorder %s29, 0
      %p102 = por %p100, %p101
      %p103 = scmp.ne.s32.totalorder %s89, %s90
      %p104 = scmp.eq.s32.totalorder %s30, 1
      %p105 = por %p103, %p104
      %p107 = scmp.ne.s32.totalorder %s90, %s106
      %p108 = scmp.eq.s32.totalorder %s30, 0
      %p109 = por %p107, %p108
      %s110 = ssub.s32 %s24, %s31
      %p111 = scmp.eq.s32.totalorder %s110, 0
      %s113 = sadd.s32 %s112, 1
      %s114 = scalar_select %p111, %s112, %s113
      %p117 = pneg %p111
      %p118 = scmp.eq.s32.totalorder %s24, 1
      %p119 = por %p117, %p118
      %p120 = scmp.ne.s32.totalorder %s112, %s115
      %p121 = scmp.eq.s32.totalorder %s24, 0
      %p122 = por %p120, %p121
      %p123 = scmp.ne.s32.totalorder %s112, %s115
      %p124 = scmp.eq.s32.totalorder %s29, 1
      %p125 = por %p123, %p124
      %p126 = scmp.ne.s32.totalorder %s115, %s116
      %p127 = scmp.eq.s32.totalorder %s29, 0
      %p128 = por %p126, %p127
      %p129 = scmp.ne.s32.totalorder %s115, %s116
      %p130 = scmp.eq.s32.totalorder %s30, 1
      %p131 = por %p129, %p130
      %p133 = scmp.ne.s32.totalorder %s116, %s132
      %p134 = scmp.eq.s32.totalorder %s30, 0
      %p135 = por %p133, %p134
      %s137 = sadd.s32 %s136, 1
      %p140 = scmp.eq.s32.totalorder %s24, 1
      %p141 = scmp.ne.s32.totalorder %s136, %s138
      %p142 = scmp.eq.s32.totalorder %s24, 0
      %p143 = por %p141, %p142
      %p144 = scmp.ne.s32.totalorder %s136, %s138
      %p145 = scmp.eq.s32.totalorder %s29, 1
      %p146 = por %p144, %p145
      %p147 = scmp.ne.s32.totalorder %s138, %s139
      %p148 = scmp.eq.s32.totalorder %s29, 0
      %p149 = por %p147, %p148
      %p150 = scmp.ne.s32.totalorder %s138, %s139
      %p151 = scmp.eq.s32.totalorder %s30, 1
      %p152 = por %p150, %p151
      %p154 = scmp.ne.s32.totalorder %s139, %s153
      %p155 = scmp.eq.s32.totalorder %s30, 0
      %p156 = por %p154, %p155
      %s158 = sadd.s32 %s157, 1
      %p161 = scmp.eq.s32.totalorder %s24, 1
      %p162 = scmp.ne.s32.totalorder %s157, %s159
      %p163 = scmp.eq.s32.totalorder %s24, 0
      %p164 = por %p162, %p163
      %p165 = scmp.ne.s32.totalorder %s157, %s159
      %p166 = scmp.eq.s32.totalorder %s29, 1
      %p167 = por %p165, %p166
      %p168 = scmp.ne.s32.totalorder %s159, %s160
      %p169 = scmp.eq.s32.totalorder %s29, 0
      %p170 = por %p168, %p169
      %p171 = scmp.ne.s32.totalorder %s159, %s160
      %p172 = scmp.eq.s32.totalorder %s30, 1
      %p173 = por %p171, %p172
      %p175 = scmp.ne.s32.totalorder %s160, %s174
      %p176 = scmp.eq.s32.totalorder %s30, 0
      %p177 = por %p175, %p176
      %s179 = sadd.s32 %s178, 1
      %p182 = scmp.eq.s32.totalorder %s24, 1
      %p183 = scmp.ne.s32.totalorder %s178, %s180
      %p184 = scmp.eq.s32.totalorder %s24, 0
      %p185 = por %p183, %p184
      %p186 = scmp.ne.s32.totalorder %s178, %s180
      %p187 = scmp.eq.s32.totalorder %s29, 1
      %p188 = por %p186, %p187
      %p189 = scmp.ne.s32.totalorder %s180, %s181
      %p190 = scmp.eq.s32.totalorder %s29, 0
      %p191 = por %p189, %p190
      %p192 = scmp.ne.s32.totalorder %s180, %s181
      %p193 = scmp.eq.s32.totalorder %s30, 1
      %p194 = por %p192, %p193
      %p196 = scmp.ne.s32.totalorder %s181, %s195
      %p197 = scmp.eq.s32.totalorder %s30, 0
      %p198 = por %p196, %p197
      %s200 = sadd.s32 %s199, 1
      %p203 = scmp.eq.s32.totalorder %s24, 1
      %p204 = scmp.ne.s32.totalorder %s199, %s201
      %p205 = scmp.eq.s32.totalorder %s24, 0
      %p206 = por %p204, %p205
      %p207 = scmp.ne.s32.totalorder %s199, %s201
      %p208 = scmp.eq.s32.totalorder %s29, 1
      %p209 = por %p207, %p208
      %p210 = scmp.ne.s32.totalorder %s201, %s202
      %p211 = scmp.eq.s32.totalorder %s29, 0
      %p212 = por %p210, %p211
      %p213 = scmp.ne.s32.totalorder %s201, %s202
      %p214 = scmp.eq.s32.totalorder %s30, 1
      %p215 = por %p213, %p214
      %p217 = scmp.ne.s32.totalorder %s202, %s216
      %p218 = scmp.eq.s32.totalorder %s30, 0
      %p219 = por %p217, %p218
      %s221 = sadd.s32 %s220, 1
      %p224 = scmp.eq.s32.totalorder %s24, 1
      %p225 = scmp.ne.s32.totalorder %s220, %s222
      %p226 = scmp.eq.s32.totalorder %s24, 0
      %p227 = por %p225, %p226
      %p228 = scmp.ne.s32.totalorder %s220, %s222
      %p229 = scmp.eq.s32.totalorder %s29, 1
      %p230 = por %p228, %p229
      %p231 = scmp.ne.s32.totalorder %s222, %s223
      %p232 = scmp.eq.s32.totalorder %s29, 0
      %p233 = por %p231, %p232
      %p234 = scmp.ne.s32.totalorder %s222, %s223
      %p235 = scmp.eq.s32.totalorder %s30, 1
      %p236 = por %p234, %p235
      %p238 = scmp.ne.s32.totalorder %s223, %s237
      %p239 = scmp.eq.s32.totalorder %s30, 0
      %p240 = por %p238, %p239
      %s242 = sadd.s32 %s241, 1
      %p245 = scmp.eq.s32.totalorder %s24, 1
      %p246 = scmp.ne.s32.totalorder %s241, %s243
      %p247 = scmp.eq.s32.totalorder %s24, 0
      %p248 = por %p246, %p247
      %p249 = scmp.ne.s32.totalorder %s241, %s243
      %p250 = scmp.eq.s32.totalorder %s29, 1
      %p251 = por %p249, %p250
      %p252 = scmp.ne.s32.totalorder %s243, %s244
      %p253 = scmp.eq.s32.totalorder %s29, 0
      %p254 = por %p252, %p253
      %p255 = scmp.ne.s32.totalorder %s243, %s244
      %p256 = scmp.eq.s32.totalorder %s30, 1
      %p257 = por %p255, %p256
      %p259 = scmp.ne.s32.totalorder %s244, %s258
      %p260 = scmp.eq.s32.totalorder %s30, 0
      %p261 = por %p259, %p260
      %s263 = sadd.s32 %s262, 1
      %p266 = scmp.eq.s32.totalorder %s24, 1
      %p267 = scmp.ne.s32.totalorder %s262, %s264
      %p268 = scmp.eq.s32.totalorder %s24, 0
      %p269 = por %p267, %p268
      %p270 = scmp.ne.s32.totalorder %s262, %s264
      %p271 = scmp.eq.s32.totalorder %s29, 1
      %p272 = por %p270, %p271
      %p273 = scmp.ne.s32.totalorder %s264, %s265
      %p274 = scmp.eq.s32.totalorder %s29, 0
      %p275 = por %p273, %p274
      %p276 = scmp.ne.s32.totalorder %s264, %s265
      %p277 = scmp.eq.s32.totalorder %s30, 1
      %p278 = por %p276, %p277
      %p280 = scmp.ne.s32.totalorder %s265, %s279
      %p281 = scmp.eq.s32.totalorder %s30, 0
      %p282 = por %p280, %p281
      %s284 = sadd.s32 %s283, 1
      %p287 = scmp.eq.s32.totalorder %s24, 1
      %p288 = scmp.ne.s32.totalorder %s283, %s285
      %p289 = scmp.eq.s32.totalorder %s24, 0
      %p290 = por %p288, %p289
      %p291 = scmp.ne.s32.totalorder %s283, %s285
      %p292 = scmp.eq.s32.totalorder %s29, 1
      %p293 = por %p291, %p292
      %p294 = scmp.ne.s32.totalorder %s285, %s286
      %p295 = scmp.eq.s32.totalorder %s29, 0
      %p296 = por %p294, %p295
      %p297 = scmp.ne.s32.totalorder %s285, %s286
      %p298 = scmp.eq.s32.totalorder %s30, 1
      %p299 = por %p297, %p298
      %p301 = scmp.ne.s32.totalorder %s286, %s300
      %p302 = scmp.eq.s32.totalorder %s30, 0
      %p303 = por %p301, %p302
      %s305 = sadd.s32 %s304, 1
      %p308 = scmp.eq.s32.totalorder %s24, 1
      %p309 = scmp.ne.s32.totalorder %s304, %s306
      %p310 = scmp.eq.s32.totalorder %s24, 0
      %p311 = por %p309, %p310
      %p312 = scmp.ne.s32.totalorder %s304, %s306
      %p313 = scmp.eq.s32.totalorder %s29, 1
      %p314 = por %p312, %p313
      %p315 = scmp.ne.s32.totalorder %s306, %s307
      %p316 = scmp.eq.s32.totalorder %s29, 0
      %p317 = por %p315, %p316
      %p318 = scmp.ne.s32.totalorder %s306, %s307
      %p319 = scmp.eq.s32.totalorder %s30, 1
      %p320 = por %p318, %p319
      %p322 = scmp.ne.s32.totalorder %s307, %s321
      %p323 = scmp.eq.s32.totalorder %s30, 0
      %p324 = por %p322, %p323
      %s325 = ssub.s32 %s24, %s31
      %p326 = scmp.eq.s32.totalorder %s325, 0
      %s328 = sadd.s32 %s327, 1
      %s329 = scalar_select %p326, %s327, %s328
      %p332 = pneg %p326
      %p333 = scmp.eq.s32.totalorder %s24, 1
      %p334 = por %p332, %p333
      %p335 = scmp.ne.s32.totalorder %s327, %s330
      %p336 = scmp.eq.s32.totalorder %s24, 0
      %p337 = por %p335, %p336
      %p338 = scmp.ne.s32.totalorder %s327, %s330
      %p339 = scmp.eq.s32.totalorder %s29, 1
      %p340 = por %p338, %p339
      %p341 = scmp.ne.s32.totalorder %s330, %s331
      %p342 = scmp.eq.s32.totalorder %s29, 0
      %p343 = por %p341, %p342
      %p344 = scmp.ne.s32.totalorder %s330, %s331
      %p345 = scmp.eq.s32.totalorder %s30, 1
      %p346 = por %p344, %p345
      %p348 = scmp.ne.s32.totalorder %s331, %s347
      %p349 = scmp.eq.s32.totalorder %s30, 0
      %p350 = por %p348, %p349
      %p351 = scmp.le.s32.totalorder 1, %s24
      %p352 = scmp.lt.s32.totalorder %s24, 3
      %p353 = pnand %p351, %p352
      %p354 = pneg %p353
      // Predicated region
      $region9: #{mamba_block_forward.3} parent=5 // pred_check
        _
      $region10: #{mamba_block_forward.3} parent=5 // pred_check_branch
        %356 = sbr.rel (%p353) target = $region12
      $region11: #{mamba_block_forward.3} parent=5 // pred_region
        %s357 = ssub.s32 %s24, 1
        // Predicated region
        $region13: #{mamba_block_forward.3} parent=11 // pred_check
          %p358 = pneg %p149
        $region14: #{mamba_block_forward.3} parent=11 // pred_check_branch
          %360 = sbr.rel (%p358) target = $region16
        $region15: #{mamba_block_forward.3} parent=11 // pred_region
          _
        $region16: #{mamba_block_forward.3} parent=11 // pred_fallthru
          _
        // Predicated region
        $region17: #{mamba_block_forward.3} parent=11 // pred_check
          %p361 = pneg %p170
        $region18: #{mamba_block_forward.3} parent=11 // pred_check_branch
          %363 = sbr.rel (%p361) target = $region20
        $region19: #{mamba_block_forward.3} parent=11 // pred_region
          _
        $region20: #{mamba_block_forward.3} parent=11 // pred_fallthru
          _
        // Predicated region
        $region21: #{mamba_block_forward.3} parent=11 // pred_check
          %p364 = pneg %p191
        $region22: #{mamba_block_forward.3} parent=11 // pred_check_branch
          %366 = sbr.rel (%p364) target = $region24
        $region23: #{mamba_block_forward.3} parent=11 // pred_region
          _
        $region24: #{mamba_block_forward.3} parent=11 // pred_fallthru
          _
        // Predicated region
        $region25: #{mamba_block_forward.3} parent=11 // pred_check
          %p367 = pneg %p212
        $region26: #{mamba_block_forward.3} parent=11 // pred_check_branch
          %369 = sbr.rel (%p367) target = $region28
        $region27: #{mamba_block_forward.3} parent=11 // pred_region
          _
        $region28: #{mamba_block_forward.3} parent=11 // pred_fallthru
          _
        // Predicated region
        $region29: #{mamba_block_forward.3} parent=11 // pred_check
          %p370 = pneg %p233
        $region30: #{mamba_block_forward.3} parent=11 // pred_check_branch
          %372 = sbr.rel (%p370) target = $region32
        $region31: #{mamba_block_forward.3} parent=11 // pred_region
          _
        $region32: #{mamba_block_forward.3} parent=11 // pred_fallthru
          _
        // Predicated region
        $region33: #{mamba_block_forward.3} parent=11 // pred_check
          %p373 = pneg %p254
        $region34: #{mamba_block_forward.3} parent=11 // pred_check_branch
          %375 = sbr.rel (%p373) target = $region36
        $region35: #{mamba_block_forward.3} parent=11 // pred_region
          _
        $region36: #{mamba_block_forward.3} parent=11 // pred_fallthru
          _
        // Predicated region
        $region37: #{mamba_block_forward.3} parent=11 // pred_check
          %p376 = pneg %p275
        $region38: #{mamba_block_forward.3} parent=11 // pred_check_branch
          %378 = sbr.rel (%p376) target = $region40
        $region39: #{mamba_block_forward.3} parent=11 // pred_region
          _
        $region40: #{mamba_block_forward.3} parent=11 // pred_fallthru
          _
        // Predicated region
        $region41: #{mamba_block_forward.3} parent=11 // pred_check
          %p379 = pneg %p296
        $region42: #{mamba_block_forward.3} parent=11 // pred_check_branch
          %381 = sbr.rel (%p379) target = $region44
        $region43: #{mamba_block_forward.3} parent=11 // pred_region
          _
        $region44: #{mamba_block_forward.3} parent=11 // pred_fallthru
          _
        // Predicated region
        $region45: #{mamba_block_forward.3} parent=11 // pred_check
          %p382 = pneg %p317
        $region46: #{mamba_block_forward.3} parent=11 // pred_check_branch
          %384 = sbr.rel (%p382) target = $region48
        $region47: #{mamba_block_forward.3} parent=11 // pred_region
          _
        $region48: #{mamba_block_forward.3} parent=11 // pred_fallthru
          _
      $region12: #{mamba_block_forward.3} parent=5 // pred_fallthru
        _
      %p385 = scmp.lt.s32.totalorder %s24, 2
      // Predicated region
      $region49: #{mamba_block_forward.3} parent=5 // pred_check
        %p386 = pneg %p385
      $region50: #{mamba_block_forward.3} parent=5 // pred_check_branch
        %388 = sbr.rel (%p386) target = $region52
      $region51: #{mamba_block_forward.3} parent=5 // pred_region
        // Predicated region
        $region53: #{mamba_block_forward.3} parent=51 // pred_check
          %p389 = pneg %p44
        $region54: #{mamba_block_forward.3} parent=51 // pred_check_branch
          %391 = sbr.rel (%p389) target = $region56
        $region55: #{mamba_block_forward.3} parent=51 // pred_region
          %p392 = scmp.lt.s32.totalorder %s24, 1
          %s393 = scalar_select %p392, %s24, 1
          %s394 = smul.addr %s393, 8
          %s395 = scalar_lea.vmem %s0, %s394
        $region56: #{mamba_block_forward.3} parent=51 // pred_fallthru
          _
        // Predicated region
        $region57: #{mamba_block_forward.3} parent=51 // pred_check
          %p396 = pneg %p70
        $region58: #{mamba_block_forward.3} parent=51 // pred_check_branch
          %398 = sbr.rel (%p396) target = $region60
        $region59: #{mamba_block_forward.3} parent=51 // pred_region
          %p399 = scmp.lt.s32.totalorder %s24, 1
          %s400 = scalar_select %p399, %s24, 1
          %s401 = smul.addr %s400, 8
          %s402 = scalar_lea.vmem %s1, %s401
        $region60: #{mamba_block_forward.3} parent=51 // pred_fallthru
          _
        // Predicated region
        $region61: #{mamba_block_forward.3} parent=51 // pred_check
          %p403 = pneg %p96
        $region62: #{mamba_block_forward.3} parent=51 // pred_check_branch
          %405 = sbr.rel (%p403) target = $region64
        $region63: #{mamba_block_forward.3} parent=51 // pred_region
          %p406 = scmp.lt.s32.totalorder %s24, 1
          %s407 = scalar_select %p406, %s24, 1
          %s408 = smul.addr %s407, 8
          %s409 = smul.addr %s408, 8
          %s410 = scalar_lea.vmem %s2, %s409
        $region64: #{mamba_block_forward.3} parent=51 // pred_fallthru
          _
        // Predicated region
        $region65: #{mamba_block_forward.3} parent=51 // pred_check
          %p411 = pneg %p122
        $region66: #{mamba_block_forward.3} parent=51 // pred_check_branch
          %413 = sbr.rel (%p411) target = $region68
        $region67: #{mamba_block_forward.3} parent=51 // pred_region
          %p414 = scmp.lt.s32.totalorder %s24, 1
          %s415 = scalar_select %p414, %s24, 1
          %s416 = smul.addr %s415, 8
          %s417 = scalar_lea.vmem %s3, %s416
        $region68: #{mamba_block_forward.3} parent=51 // pred_fallthru
          _
      $region52: #{mamba_block_forward.3} parent=5 // pred_fallthru
        _
      %p418 = scmp.le.s32.totalorder 1, %s24
      %p419 = scmp.lt.s32.totalorder %s24, 3
      %p420 = pnand %p418, %p419
      %p421 = pneg %p420
      // Predicated region
      $region69: #{mamba_block_forward.3} parent=5 // pred_check
        _
      $region70: #{mamba_block_forward.3} parent=5 // pred_check_branch
        %423 = sbr.rel (%p420) target = $region72
      $region71: #{mamba_block_forward.3} parent=5 // pred_region
        %s424 = ssub.s32 %s24, 1
        %p425 = scmp.lt.s32.totalorder %s29, 1
        %s426 = scalar_select %p425, %s29, 1
        %s427 = smul.addr %s426, 8
        %s428 = scalar_lea.vmem %s0, %s427
        %p429 = pneg %p50
        %p430 = pneg %p47
        %p431 = scmp.lt.s32.totalorder %s29, 1
        %s432 = scalar_select %p431, %s29, 1
        %s433 = smul.addr %s432, 8
        %s434 = scalar_lea.vmem %s1, %s433
        %p435 = pneg %p76
        %p436 = pneg %p73
        %p437 = scmp.lt.s32.totalorder %s29, 1
        %s438 = scalar_select %p437, %s29, 1
        %s439 = smul.addr %s438, 8
        %s440 = smul.addr %s439, 8
        %s441 = scalar_lea.vmem %s2, %s440
        %p442 = pneg %p102
        %p443 = pneg %p99
        %p444 = scmp.lt.s32.totalorder %s29, 1
        %s445 = scalar_select %p444, %s29, 1
        %s446 = smul.addr %s445, 8
        %s447 = scalar_lea.vmem %s3, %s446
        %p448 = pneg %p128
        %p449 = pneg %p125
        %p450 = pneg %p149
        %p451 = pneg %p146
        %p452 = pneg %p170
        %p453 = pneg %p167
        %p454 = pneg %p191
        %p455 = pneg %p188
        %p456 = pneg %p212
        %p457 = pneg %p209
        %p458 = pneg %p233
        %p459 = pneg %p230
        %p460 = pneg %p254
        %p461 = pneg %p251
        %p462 = pneg %p275
        %p463 = pneg %p272
        %p464 = pneg %p296
        %p465 = pneg %p293
        %p466 = pneg %p317
        %p467 = pneg %p314
        %p468 = pneg %p343
        %p469 = pneg %p340
        %s470 = sand.u32 %s330, 1
        %s471 = scalar_lea.sflag [#allocation4], %s470
        %s472 = sand.u32 %s330, 1
        %s473 = smul.addr %s472, 8
        %s474 = scalar_lea.vmem [#allocation3], %s473
        %p475 = scmp.lt.s32.totalorder %s29, 1
        %s476 = scalar_select %p475, %s29, 1
        %s477 = smul.addr %s476, 8
        %s478 = scalar_lea.vmem %s0, %s477
        %p479 = scmp.lt.s32.totalorder %s29, 1
        %s480 = scalar_select %p479, %s29, 1
        %s481 = smul.addr %s480, 8
        %s482 = scalar_lea.vmem %s1, %s481
        %p483 = scmp.lt.s32.totalorder %s29, 1
        %s484 = scalar_select %p483, %s29, 1
        %s485 = smul.addr %s484, 8
        %s486 = smul.addr %s485, 8
        %s487 = scalar_lea.vmem %s2, %s486
        %p488 = scmp.lt.s32.totalorder %s29, 1
        %s489 = scalar_select %p488, %s29, 1
        %s490 = smul.addr %s489, 8
        %s491 = scalar_lea.vmem %s3, %s490
        %v492 = vld [vmem:[%s4] sm:$0xff]
        %v493 = vld [vmem:[%s4 + $0x8] sm:$0xff]
        %v494 = vld [vmem:[%s487] sm:$0xff]
        %v495 = vld [vmem:[%s487 + $0x8] sm:$0xff]
        %v496 = vld [vmem:[%s487 + $0x10] sm:$0xff]
        %v497 = vld [vmem:[%s487 + $0x18] sm:$0xff]
        %v498 = vld [vmem:[%s487 + $0x20] sm:$0xff]
        %v499 = vld [vmem:[%s487 + $0x28] sm:$0xff]
        %v500 = vld [vmem:[%s487 + $0x30] sm:$0xff]
        %v501 = vld [vmem:[%s487 + $0x38] sm:$0xff]
        %v502 = vld [vmem:[%s5] sm:$0xff]
        %v503 = vld [vmem:[%s5 + $0x8] sm:$0xff]
        %505 = vset.pattern.permute.xlu0 0
        %506 = vperm.xlu0 %505, %v502
        %v507 = vpop.permute.xlu0 %506
        %510 = vset.pattern.permute.xlu0 0
        %511 = vperm.xlu0 %510, %v503
        %v512 = vpop.permute.xlu0 %511
        %vm514 = vcmask 523264
        %v516 = vsel %vm514, %v492, 0
        %v519 = vsel %vm514, %v493, 0
        %521 = vmatprep.subr.mxu0 0.0
        %522 = vmatpush1.msra.mxu0 0.0
        %523 = vmatprep.subr.mxu0 0.0
        %524 = vmatpush1.msra.mxu0 0.0
        %525 = vmatprep.subr.mxu0 0.0
        %526 = vmatpush1.msra.mxu0 0.0
        %527 = vmatprep.subr.mxu0 0.0
        %528 = vmatpush1.msra.mxu0 0.0
        %529 = vmatprep.subr.mxu0 0.0
        %530 = vmatpush1.msra.mxu0 0.0
        %531 = vmatprep.subr.mxu0 0.0
        %532 = vmatpush1.msra.mxu0 0.0
        %533 = vmatprep.subr.mxu0 0.0
        %534 = vmatpush1.msra.mxu0 0.0
        %535 = vmatprep.subr.mxu0 0.0
        %536 = vmatpush1.msra.mxu0 0.0
        %537 = vmatprep.subr.mxu0 0.0
        %538 = vmatpush1.msra.mxu0 %v501
        %539 = vmatprep.subr.mxu0 0.0
        %540 = vmatpush1.msra.mxu0 %v500
        %541 = vmatprep.subr.mxu0 0.0
        %542 = vmatpush1.msra.mxu0 %v499
        %543 = vmatprep.subr.mxu0 0.0
        %544 = vmatpush1.msra.mxu0 %v498
        %545 = vmatprep.subr.mxu0 0.0
        %546 = vmatpush1.msra.mxu0 %v497
        %547 = vmatprep.subr.mxu0 0.0
        %548 = vmatpush1.msra.mxu0 %v496
        %549 = vmatprep.subr.mxu0 0.0
        %550 = vmatpush1.msra.mxu0 %v495
        %551 = vmatprep.subr.mxu0 0.0
        %552 = vmatpush1.msra.mxu0 %v494
        %553 = vmatprep.subr.mxu0 0.0
        %554 = vmatpush2.msra.mxu0 0.0
        %555 = vmatprep.subr.mxu0 0.0
        %556 = vmatpush2.msra.mxu0 0.0
        %557 = vmatprep.subr.mxu0 0.0
        %558 = vmatpush2.msra.mxu0 0.0
        %559 = vmatprep.subr.mxu0 0.0
        %560 = vmatpush2.msra.mxu0 0.0
        %561 = vmatprep.subr.mxu0 0.0
        %562 = vmatpush2.msra.mxu0 0.0
        %563 = vmatprep.subr.mxu0 0.0
        %564 = vmatpush2.msra.mxu0 0.0
        %565 = vmatprep.subr.mxu0 0.0
        %566 = vmatpush2.msra.mxu0 0.0
        %567 = vmatprep.subr.mxu0 0.0
        %568 = vmatpush2.msra.mxu0 0.0
        %569 = vmatprep.subr.mxu0 0.0
        %570 = vmatpush2.msra.mxu0 0.0
        %571 = vmatprep.subr.mxu0 0.0
        %572 = vmatpush2.msra.mxu0 0.0
        %573 = vmatprep.subr.mxu0 0.0
        %574 = vmatpush2.msra.mxu0 0.0
        %575 = vmatprep.subr.mxu0 0.0
        %576 = vmatpush2.msra.mxu0 0.0
        %577 = vmatprep.subr.mxu0 0.0
        %578 = vmatpush2.msra.mxu0 0.0
        %579 = vmatprep.subr.mxu0 0.0
        %580 = vmatpush2.msra.mxu0 0.0
        %581 = vmatprep.subr.mxu0 0.0
        %582 = vmatpush2.msra.mxu0 0.0
        %583 = vmatprep.subr.mxu0 0.0
        %584 = vmatpush2.msra.mxu0 0.0
        %585 = vmatprep.mubr.f32.mxu0 0.0
        %586 = vmatmul.mubr.f32.gmra.mxu0 %v516
        %v587 = vpop.f32.mrf.mxu0
        %v588 = vadd.f32 %v507, %v587
        %v589 = vpop.f32.mrf.mxu0
        %590 = vmatprep.mubr.f32.mxu0 0.0
        %591 = vmatmul.mubr.f32.gmra.mxu0 %v519
        %v592 = vpop.f32.mrf.mxu0
        %v593 = vadd.f32 %v512, %v592
        %v594 = vpop.f32.mrf.mxu0
        %595 = vdwg.mxu0
        %v596 = vmax.f32 %v588, 0.0
        %v597 = vmax.f32 %v593, 0.0
        %v598 = vand.u32 2147483647, %v588
        %v599 = vand.u32 2147483647, %v593
        %v600 = vsub.f32 0.0, %v598
        %v601 = vsub.f32 0.0, %v599
        %v602 = vmul.f32 %v600, 1.442695
        %v603 = vpow.pop %v602
        %v604 = vmul.f32 %v601, 1.442695
        %v605 = vpow.pop %v604
        %v606 = vadd.f32 %v603, 1.0
        %v607 = vadd.f32 %v605, 1.0
        %v608 = vlog2.pop %v606
        %v609 = vmul.f32 %v608, 0.6931472
        %v610 = vlog2.pop %v607
        %v611 = vmul.f32 %v610, 0.6931472
        %v612 = vadd.f32 %v596, %v609
        %v613 = vadd.f32 %v597, %v611
        %v614 = vsub.f32 0.0, %v612
        %v615 = vsub.f32 0.0, %v613
        %v616 = vld [vmem:[%s6] sm:$0xff]
        %v617 = vld [vmem:[%s6 + $0x8] sm:$0xff]
        %619 = vset.pattern.permute.xlu0 0
        %620 = vperm.xlu0 %619, %v616
        %v621 = vpop.permute.xlu0 %620
        %624 = vset.pattern.permute.xlu0 0
        %625 = vperm.xlu0 %624, %v617
        %v626 = vpop.permute.xlu0 %625
        %v628 = vmul.f32 %v614, %v621
        %v629 = vmul.f32 %v615, %v626
        %v630 = vmul.f32 %v628, 1.442695
        %v631 = vpow.pop %v630
        %v632 = vmul.f32 %v629, 1.442695
        %v633 = vpow.pop %v632
        %v634 = vld [vmem:[%s482] sm:$0xff]
        %v635 = vld [vmem:[%s9] sm:$0x1]
        %v637 = vlaneseq
        %v638 = vshrl.u32 %v637, 7
        %v639 = vsub.s32 0, %v638
        %v640 = vrot.slane %v635, %v639
        %v642 = vmul.f32 %v634, %v640
        %v643 = vsel %vm514, %v642, 0.0
        %644 = vadd.xlane.f32.xlu0 %v643
        %v645 = vpop.xlane.xlu0 %644
        %v646 = vld [vmem:[#allocation2] sm:$0x1]
        %v648 = vlaneseq
        %v649 = vshrl.u32 %v648, 7
        %v650 = vsub.s32 0, %v649
        %v651 = vrot.slane %v646, %v650
        %v653 = vadd.f32 %v645, %v651
        %v654 = vld [vmem:[%s478] sm:$0xff]
        %v655 = vld [vmem:[%s7] sm:$0xff]
        %v656 = vld [vmem:[%s7 + $0x8] sm:$0xff]
        %v657 = vld [vmem:[%s8] sm:$0xff]
        %v658 = vld [vmem:[%s8 + $0x8] sm:$0xff]
        %v659 = vlaneseq
        %v660 = vshrl.u32 %v659, 7
        %662 = vset.pattern.permute.xlu0 0
        %663 = vperm.xlu0 %662, %v631
        %v664 = vpop.permute.xlu0 %663
        %667 = vset.pattern.permute.xlu0 0
        %668 = vperm.xlu0 %667, %v633
        %v669 = vpop.permute.xlu0 %668
        %v671 = vmul.f32 %v664, 0.0
        %v672 = vmul.f32 %v669, 0.0
        %v673 = vlaneseq
        %v674 = vshrl.u32 %v673, 7
        %v675 = vsub.s32 0, %v674
        %v676 = vrot.slane %v654, %v675
        %v677 = vmul.f32 %v676, %v655
        %v678 = vmul.f32 %v676, %v656
        %v679 = vadd.f32 %v671, %v677
        %v680 = vadd.f32 %v672, %v678
        %v681 = vmul.f32 %v679, %v657
        %v682 = vmul.f32 %v680, %v658
        %v683 = vsel %vm514, %v681, 0.0
        %v684 = vsel %vm514, %v682, 0.0
        %v685 = vadd.f32 %v683, %v684
        %v686 = vrot.slane %v685, 4
        %v687 = vadd.f32 %v685, %v686
        %v688 = vrot.slane %v687, 2
        %v689 = vadd.f32 %v687, %v688
        %v690 = vrot.slane %v689, 1
        %v691 = vadd.f32 %v689, %v690
        %vm692 = vcmp.eq.s32.totalorder %v660, 0
        %v693 = vsel %vm692, %v691, 0.0
        %694 = vset.pattern.permute.xlu0 1
        %695 = vperm.xlu0 %694, %v631
        %v696 = vpop.permute.xlu0 %695
        %698 = vset.pattern.permute.xlu0 1
        %699 = vperm.xlu0 %698, %v633
        %v700 = vpop.permute.xlu0 %699
        %v702 = vmul.f32 %v679, %v696
        %v703 = vmul.f32 %v680, %v700
        %v704 = vlaneseq
        %v705 = vshrl.u32 %v704, 7
        %v706 = vsub.s32 1, %v705
        %v707 = vrot.slane %v654, %v706
        %v708 = vmul.f32 %v707, %v655
        %v709 = vmul.f32 %v707, %v656
        %v710 = vadd.f32 %v702, %v708
        %v711 = vadd.f32 %v703, %v709
        %v712 = vmul.f32 %v710, %v657
        %v713 = vmul.f32 %v711, %v658
        %v714 = vsel %vm514, %v712, 0.0
        %v715 = vsel %vm514, %v713, 0.0
        %v716 = vadd.f32 %v714, %v715
        %v717 = vrot.slane %v716, 4
        %v718 = vadd.f32 %v716, %v717
        %v719 = vrot.slane %v718, 2
        %v720 = vadd.f32 %v718, %v719
        %v721 = vrot.slane %v720, 1
        %v722 = vadd.f32 %v720, %v721
        %vm723 = vcmp.eq.s32.totalorder %v660, 1
        %v724 = vsel %vm723, %v722, %v693
        %725 = vset.pattern.permute.xlu0 2
        %726 = vperm.xlu0 %725, %v631
        %v727 = vpop.permute.xlu0 %726
        %729 = vset.pattern.permute.xlu0 2
        %730 = vperm.xlu0 %729, %v633
        %v731 = vpop.permute.xlu0 %730
        %v733 = vmul.f32 %v710, %v727
        %v734 = vmul.f32 %v711, %v731
        %v735 = vlaneseq
        %v736 = vshrl.u32 %v735, 7
        %v737 = vsub.s32 2, %v736
        %v738 = vrot.slane %v654, %v737
        %v739 = vmul.f32 %v738, %v655
        %v740 = vmul.f32 %v738, %v656
        %v741 = vadd.f32 %v733, %v739
        %v742 = vadd.f32 %v734, %v740
        %v743 = vmul.f32 %v741, %v657
        %v744 = vmul.f32 %v742, %v658
        %v745 = vsel %vm514, %v743, 0.0
        %v746 = vsel %vm514, %v744, 0.0
        %v747 = vadd.f32 %v745, %v746
        %v748 = vrot.slane %v747, 4
        %v749 = vadd.f32 %v747, %v748
        %v750 = vrot.slane %v749, 2
        %v751 = vadd.f32 %v749, %v750
        %v752 = vrot.slane %v751, 1
        %v753 = vadd.f32 %v751, %v752
        %vm754 = vcmp.eq.s32.totalorder %v660, 2
        %v755 = vsel %vm754, %v753, %v724
        %756 = vset.pattern.permute.xlu0 3
        %757 = vperm.xlu0 %756, %v631
        %v758 = vpop.permute.xlu0 %757
        %760 = vset.pattern.permute.xlu0 3
        %761 = vperm.xlu0 %760, %v633
        %v762 = vpop.permute.xlu0 %761
        %v764 = vmul.f32 %v741, %v758
        %v765 = vmul.f32 %v742, %v762
        %v766 = vlaneseq
        %v767 = vshrl.u32 %v766, 7
        %v768 = vsub.s32 3, %v767
        %v769 = vrot.slane %v654, %v768
        %v770 = vmul.f32 %v769, %v655
        %v771 = vmul.f32 %v769, %v656
        %v772 = vadd.f32 %v764, %v770
        %v773 = vadd.f32 %v765, %v771
        %v774 = vmul.f32 %v772, %v657
        %v775 = vmul.f32 %v773, %v658
        %v776 = vsel %vm514, %v774, 0.0
        %v777 = vsel %vm514, %v775, 0.0
        %v778 = vadd.f32 %v776, %v777
        %v779 = vrot.slane %v778, 4
        %v780 = vadd.f32 %v778, %v779
        %v781 = vrot.slane %v780, 2
        %v782 = vadd.f32 %v780, %v781
        %v783 = vrot.slane %v782, 1
        %v784 = vadd.f32 %v782, %v783
        %vm785 = vcmp.eq.s32.totalorder %v660, 3
        %v786 = vsel %vm785, %v784, %v755
        %787 = vset.pattern.permute.xlu0 4
        %788 = vperm.xlu0 %787, %v631
        %v789 = vpop.permute.xlu0 %788
        %791 = vset.pattern.permute.xlu0 4
        %792 = vperm.xlu0 %791, %v633
        %v793 = vpop.permute.xlu0 %792
        %v795 = vmul.f32 %v772, %v789
        %v796 = vmul.f32 %v773, %v793
        %v797 = vlaneseq
        %v798 = vshrl.u32 %v797, 7
        %v799 = vsub.s32 4, %v798
        %v800 = vrot.slane %v654, %v799
        %v801 = vmul.f32 %v800, %v655
        %v802 = vmul.f32 %v800, %v656
        %v803 = vadd.f32 %v795, %v801
        %v804 = vadd.f32 %v796, %v802
        %v805 = vmul.f32 %v803, %v657
        %v806 = vmul.f32 %v804, %v658
        %v807 = vsel %vm514, %v805, 0.0
        %v808 = vsel %vm514, %v806, 0.0
        %v809 = vadd.f32 %v807, %v808
        %v810 = vrot.slane %v809, 4
        %v811 = vadd.f32 %v809, %v810
        %v812 = vrot.slane %v811, 2
        %v813 = vadd.f32 %v811, %v812
        %v814 = vrot.slane %v813, 1
        %v815 = vadd.f32 %v813, %v814
        %vm816 = vcmp.eq.s32.totalorder %v660, 4
        %v817 = vsel %vm816, %v815, %v786
        %818 = vset.pattern.permute.xlu0 5
        %819 = vperm.xlu0 %818, %v631
        %v820 = vpop.permute.xlu0 %819
        %822 = vset.pattern.permute.xlu0 5
        %823 = vperm.xlu0 %822, %v633
        %v824 = vpop.permute.xlu0 %823
        %v826 = vmul.f32 %v803, %v820
        %v827 = vmul.f32 %v804, %v824
        %v828 = vlaneseq
        %v829 = vshrl.u32 %v828, 7
        %v830 = vsub.s32 5, %v829
        %v831 = vrot.slane %v654, %v830
        %v832 = vmul.f32 %v831, %v655
        %v833 = vmul.f32 %v831, %v656
        %v834 = vadd.f32 %v826, %v832
        %v835 = vadd.f32 %v827, %v833
        %v836 = vmul.f32 %v834, %v657
        %v837 = vmul.f32 %v835, %v658
        %v838 = vsel %vm514, %v836, 0.0
        %v839 = vsel %vm514, %v837, 0.0
        %v840 = vadd.f32 %v838, %v839
        %v841 = vrot.slane %v840, 4
        %v842 = vadd.f32 %v840, %v841
        %v843 = vrot.slane %v842, 2
        %v844 = vadd.f32 %v842, %v843
        %v845 = vrot.slane %v844, 1
        %v846 = vadd.f32 %v844, %v845
        %vm847 = vcmp.eq.s32.totalorder %v660, 5
        %v848 = vsel %vm847, %v846, %v817
        %849 = vset.pattern.permute.xlu0 6
        %850 = vperm.xlu0 %849, %v631
        %v851 = vpop.permute.xlu0 %850
        %853 = vset.pattern.permute.xlu0 6
        %854 = vperm.xlu0 %853, %v633
        %v855 = vpop.permute.xlu0 %854
        %v857 = vmul.f32 %v834, %v851
        %v858 = vmul.f32 %v835, %v855
        %v859 = vlaneseq
        %v860 = vshrl.u32 %v859, 7
        %v861 = vsub.s32 6, %v860
        %v862 = vrot.slane %v654, %v861
        %v863 = vmul.f32 %v862, %v655
        %v864 = vmul.f32 %v862, %v656
        %v865 = vadd.f32 %v857, %v863
        %v866 = vadd.f32 %v858, %v864
        %v867 = vmul.f32 %v865, %v657
        %v868 = vmul.f32 %v866, %v658
        %v869 = vsel %vm514, %v867, 0.0
        %v870 = vsel %vm514, %v868, 0.0
        %v871 = vadd.f32 %v869, %v870
        %v872 = vrot.slane %v871, 4
        %v873 = vadd.f32 %v871, %v872
        %v874 = vrot.slane %v873, 2
        %v875 = vadd.f32 %v873, %v874
        %v876 = vrot.slane %v875, 1
        %v877 = vadd.f32 %v875, %v876
        %vm878 = vcmp.eq.s32.totalorder %v660, 6
        %v879 = vsel %vm878, %v877, %v848
        %880 = vset.pattern.permute.xlu0 7
        %881 = vperm.xlu0 %880, %v631
        %v882 = vpop.permute.xlu0 %881
        %884 = vset.pattern.permute.xlu0 7
        %885 = vperm.xlu0 %884, %v633
        %v886 = vpop.permute.xlu0 %885
        %v888 = vmul.f32 %v865, %v882
        %v889 = vmul.f32 %v866, %v886
        %v890 = vlaneseq
        %v891 = vshrl.u32 %v890, 7
        %v892 = vsub.s32 7, %v891
        %v893 = vrot.slane %v654, %v892
        %v894 = vmul.f32 %v893, %v655
        %v895 = vmul.f32 %v893, %v656
        %v896 = vadd.f32 %v888, %v894
        %v897 = vadd.f32 %v889, %v895
        %v898 = vmul.f32 %v896, %v657
        %v899 = vmul.f32 %v897, %v658
        %v900 = vsel %vm514, %v898, 0.0
        %v901 = vsel %vm514, %v899, 0.0
        %v902 = vadd.f32 %v900, %v901
        %v903 = vrot.slane %v902, 4
        %v904 = vadd.f32 %v902, %v903
        %v905 = vrot.slane %v904, 2
        %v906 = vadd.f32 %v904, %v905
        %v907 = vrot.slane %v906, 1
        %v908 = vadd.f32 %v906, %v907
        %vm909 = vcmp.eq.s32.totalorder %v660, 7
        %v910 = vsel %vm909, %v908, %v879
        %v911 = vsub.f32 0.0, %v653
        %v912 = vmul.f32 %v911, 1.442695
        %v913 = vpow.pop %v912
        %v914 = vadd.f32 %v913, 1.0
        %v915 = vrcp.pop %v914
        %v916 = vmul.f32 1.0, %v915
        %v917 = vmul.f32 %v653, %v916
        %919 = vset.pattern.permute.xlu0 0
        %920 = vperm.xlu0 %919, %v917
        %v921 = vpop.permute.xlu0 %920
        %v923 = vmul.f32 %v910, %v921
        %v924 = vld [vmem:[%s491] sm:$0xff]
        %v925 = vadd.f32 %v923, %v924
        %v926 = vld [vmem:[%s11] sm:$0xff]
        %v927 = vld [vmem:[%s11 + $0x8] sm:$0xff]
        %v928 = vld [vmem:[%s11 + $0x10] sm:$0xff]
        %v929 = vld [vmem:[%s11 + $0x18] sm:$0xff]
        %v930 = vld [vmem:[%s11 + $0x20] sm:$0xff]
        %v931 = vld [vmem:[%s11 + $0x28] sm:$0xff]
        %v932 = vld [vmem:[%s11 + $0x30] sm:$0xff]
        %v933 = vld [vmem:[%s11 + $0x38] sm:$0xff]
        %v934 = vld [vmem:[%s12] sm:$0x1]
        %v936 = vlaneseq
        %v937 = vshrl.u32 %v936, 7
        %v938 = vsub.s32 0, %v937
        %v939 = vrot.slane %v934, %v938
        %v942 = vsel %vm514, %v925, 0
        %944 = vmatprep.subr.mxu0 0.0
        %945 = vmatpush1.msra.mxu0 0.0
        %946 = vmatprep.subr.mxu0 0.0
        %947 = vmatpush1.msra.mxu0 0.0
        %948 = vmatprep.subr.mxu0 0.0
        %949 = vmatpush1.msra.mxu0 0.0
        %950 = vmatprep.subr.mxu0 0.0
        %951 = vmatpush1.msra.mxu0 0.0
        %952 = vmatprep.subr.mxu0 0.0
        %953 = vmatpush1.msra.mxu0 0.0
        %954 = vmatprep.subr.mxu0 0.0
        %955 = vmatpush1.msra.mxu0 0.0
        %956 = vmatprep.subr.mxu0 0.0
        %957 = vmatpush1.msra.mxu0 0.0
        %958 = vmatprep.subr.mxu0 0.0
        %959 = vmatpush1.msra.mxu0 0.0
        %960 = vmatprep.subr.mxu0 0.0
        %961 = vmatpush1.msra.mxu0 %v933
        %962 = vmatprep.subr.mxu0 0.0
        %963 = vmatpush1.msra.mxu0 %v932
        %964 = vmatprep.subr.mxu0 0.0
        %965 = vmatpush1.msra.mxu0 %v931
        %966 = vmatprep.subr.mxu0 0.0
        %967 = vmatpush1.msra.mxu0 %v930
        %968 = vmatprep.subr.mxu0 0.0
        %969 = vmatpush1.msra.mxu0 %v929
        %970 = vmatprep.subr.mxu0 0.0
        %971 = vmatpush1.msra.mxu0 %v928
        %972 = vmatprep.subr.mxu0 0.0
        %973 = vmatpush1.msra.mxu0 %v927
        %974 = vmatprep.subr.mxu0 0.0
        %975 = vmatpush1.msra.mxu0 %v926
        %976 = vmatprep.subr.mxu0 0.0
        %977 = vmatpush2.msra.mxu0 0.0
        %978 = vmatprep.subr.mxu0 0.0
        %979 = vmatpush2.msra.mxu0 0.0
        %980 = vmatprep.subr.mxu0 0.0
        %981 = vmatpush2.msra.mxu0 0.0
        %982 = vmatprep.subr.mxu0 0.0
        %983 = vmatpush2.msra.mxu0 0.0
        %984 = vmatprep.subr.mxu0 0.0
        %985 = vmatpush2.msra.mxu0 0.0
        %986 = vmatprep.subr.mxu0 0.0
        %987 = vmatpush2.msra.mxu0 0.0
        %988 = vmatprep.subr.mxu0 0.0
        %989 = vmatpush2.msra.mxu0 0.0
        %990 = vmatprep.subr.mxu0 0.0
        %991 = vmatpush2.msra.mxu0 0.0
        %992 = vmatprep.subr.mxu0 0.0
        %993 = vmatpush2.msra.mxu0 0.0
        %994 = vmatprep.subr.mxu0 0.0
        %995 = vmatpush2.msra.mxu0 0.0
        %996 = vmatprep.subr.mxu0 0.0
        %997 = vmatpush2.msra.mxu0 0.0
        %998 = vmatprep.subr.mxu0 0.0
        %999 = vmatpush2.msra.mxu0 0.0
        %1000 = vmatprep.subr.mxu0 0.0
        %1001 = vmatpush2.msra.mxu0 0.0
        %1002 = vmatprep.subr.mxu0 0.0
        %1003 = vmatpush2.msra.mxu0 0.0
        %1004 = vmatprep.subr.mxu0 0.0
        %1005 = vmatpush2.msra.mxu0 0.0
        %1006 = vmatprep.subr.mxu0 0.0
        %1007 = vmatpush2.msra.mxu0 0.0
        %1008 = vmatprep.mubr.f32.mxu0 0.0
        %1009 = vmatmul.mubr.f32.gmra.mxu0 %v942
        %v1010 = vpop.f32.mrf.mxu0
        %v1011 = vadd.f32 %v939, %v1010
        %v1012 = vpop.f32.mrf.mxu0
        %1013 = vdwg.mxu0
        %1014 = vst [vmem:[%s474] sm:$0xff] %v1011
        %s1015 = sand.u32 %s330, 1
        %s1016 = scalar_lea.sflag [#allocation4], %s1015
        %s1017 = sand.u32 %s330, 1
        %s1018 = smul.addr %s1017, 8
        %s1019 = scalar_lea.vmem [#allocation3], %s1018
        // Predicated region
        $region73: #{mamba_block_forward.3} parent=71 // pred_check
          %p1020 = pneg %p340
        $region74: #{mamba_block_forward.3} parent=71 // pred_check_branch
          %1022 = sbr.rel (%p1020) target = $region76
        $region75: #{mamba_block_forward.3} parent=71 // pred_region
          %s1024 = ssub.s32 128, 128
          %1025 = vsyncadd %s1016, %s1024
          %s1026 = smul.addr %s29, 128
          %s1027 = scalar_lea.hbm %s13, %s1026
          %s1029 = sshll.u32 %s1019, 4
          %s1030 = int_to_ptr.vmem [resolvable:$true] %s1029
          %1032 = dma.vmem_to_hbm [thread:$0]  %s1030, 128, %s1027, %s1016
        $region76: #{mamba_block_forward.3} parent=71 // pred_fallthru
          _
      $region72: #{mamba_block_forward.3} parent=5 // pred_fallthru
        _
      %p1033 = scmp.le.s32.totalorder 2, %s24
      // Predicated region
      $region77: #{mamba_block_forward.3} parent=5 // pred_check
        %p1034 = pneg %p1033
      $region78: #{mamba_block_forward.3} parent=5 // pred_check_branch
        %1036 = sbr.rel (%p1034) target = $region80
      $region79: #{mamba_block_forward.3} parent=5 // pred_region
        %s1037 = ssub.s32 %s24, 2
        // Predicated region
        $region81: #{mamba_block_forward.3} parent=79 // pred_check
          %p1038 = pneg %p346
        $region82: #{mamba_block_forward.3} parent=79 // pred_check_branch
          %1040 = sbr.rel (%p1038) target = $region84
        $region83: #{mamba_block_forward.3} parent=79 // pred_region
          %s1041 = sand.u32 %s331, 1
          %s1042 = scalar_lea.sflag [#allocation4], %s1041
          %s1043 = sand.u32 %s331, 1
          %s1044 = smul.addr %s1043, 8
          %s1045 = scalar_lea.vmem [#allocation3], %s1044
          %1046 = dma.done %s1042, 128
        $region84: #{mamba_block_forward.3} parent=79 // pred_fallthru
          _
      $region80: #{mamba_block_forward.3} parent=5 // pred_fallthru
        _
    $region6: #{mamba_block_forward.3} parent=1 // loop_footer
      %s28 = sadd.s32 1, %s24
    $region7: #{mamba_block_forward.3} parent=1 // loop_footer_branch
      %23 = sbr.rel target = $region3
    $region8: #{mamba_block_forward.3} parent=1 // loop_exit
      _
    %1047 = vsyncpa [#allocation4], 1
    %s1048 = scalar_lea.sflag [#allocation4], 1
    %1049 = vsyncpa %s1048, 1

</llo_original>
